<compile_context>
chip_gen: v7x
topology: tpu7x:2x2x1
jax: 0.10.0
libtpu: 0.0.40
codegen_flags: <defaults>
</compile_context>

<pallas_src>
import jax
import jax.numpy as jnp
from jax.experimental import pallas as pl
from jax.experimental.pallas import tpu as pltpu


def _vmem_capacity_bytes():
    """Physical VMEM of the local chip; conservative 64 MiB (v7x) if unknown."""
    try:
        return int(pltpu.get_tpu_info().vmem_capacity_bytes)
    except Exception:
        return 64 * 1024 * 1024


def _pick_batch_block(B, per_image_bytes, vmem_limit_bytes):
    """Largest batch block that (double-buffered in+out) fits VMEM comfortably,
    keeping >=2 grid steps on the parallel axis when B allows (v7x megacore)."""
    budget = (vmem_limit_bytes * 3) // 4
    max_bb = max(1, budget // (4 * per_image_bytes))   # 2x-buffered in + 2x-buffered out
    bb = min(B, max_bb)
    if B >= 2:
        bb = min(bb, max(1, B // 2))                    # keep >= 2 grid steps
    bb = max(1, bb)
    while B % bb:                                       # avoid partial last block
        bb -= 1
    return bb


def _make_decoder(B, A, P, GG, stride, bb, io_dtype,
                  fuse_transpose, buffered_consts, vmem_limit_bytes):
    """Build the pallas_call callable for one configuration."""
    AP = A * P

    def kernel(pred_ref, gxy_ref, anc_ref, out_ref, *scratch):
        # (2, GG) grid offsets (already * stride), VMEM-resident constant.
        gxy = gxy_ref[...].astype(jnp.float32)
        for i in range(bb):                     # static unroll over the batch block
            for a in range(A):                  # static unroll over anchors
                base = a * P
                xy_raw = pred_ref[i, pl.ds(base, 2), :].astype(jnp.float32)
                wh_raw = pred_ref[i, pl.ds(base + 2, 2), :].astype(jnp.float32)
                rest_raw = pred_ref[i, pl.ds(base + 4, P - 4), :].astype(jnp.float32)
                # Transcendentals only where needed: sigmoid on x/y/conf/cls rows,
                # exp on the two w/h rows (anchors folded in image units).
                xy = jax.nn.sigmoid(xy_raw) * stride + gxy                  # (2, GG)
                wh = jnp.exp(wh_raw) * anc_ref[pl.ds(2 * a, 2), :]          # (2, GG)
                rest = jax.nn.sigmoid(rest_raw)                             # (P-4, GG)
                if fuse_transpose:
                    buf = scratch[0]                                        # (P, GG) f32
                    buf[pl.ds(0, 2), :] = xy
                    buf[pl.ds(2, 2), :] = wh
                    buf[pl.ds(4, P - 4), :] = rest
                    # (P, GG) -> (GG, P) on the XLU; store the PyTorch layout directly.
                    out_ref[i, pl.ds(a * GG, GG), :] = (
                        jnp.transpose(buf[...]).astype(out_ref.dtype))
                else:
                    # Lane-dense (AP, GG) output; layout glue happens in the wrapper.
                    out_ref[i, pl.ds(base, 2), :] = xy.astype(out_ref.dtype)
                    out_ref[i, pl.ds(base + 2, 2), :] = wh.astype(out_ref.dtype)
                    out_ref[i, pl.ds(base + 4, P - 4), :] = rest.astype(out_ref.dtype)

    const_kw = {"pipeline_mode": pl.Buffered(1)} if buffered_consts else {}
    out_rows = A * GG if fuse_transpose else AP
    out_cols = P if fuse_transpose else GG

    # TODO(synk): for B == 1 serving on v7x, add a second "parallel" grid axis that
    # splits GG into 128-lane chunks so both TensorCores get work.
    return pl.pallas_call(
        kernel,
        out_shape=jax.ShapeDtypeStruct((B, out_rows, out_cols), io_dtype),
        grid=(B // bb,),
        in_specs=[
            pl.BlockSpec((bb, AP, GG), lambda b: (b, 0, 0)),            # predictions
            pl.BlockSpec((2, GG), lambda b: (0, 0), **const_kw),        # gx/gy * stride
            pl.BlockSpec((2 * A, 1), lambda b: (0, 0), **const_kw),     # anchors (w,h) per anchor
        ],
        out_specs=pl.BlockSpec((bb, out_rows, out_cols), lambda b: (b, 0, 0)),
        scratch_shapes=([pltpu.VMEM((P, GG), jnp.float32)] if fuse_transpose else []),
        compiler_params=pltpu.CompilerParams(
            dimension_semantics=("parallel",),
            vmem_limit_bytes=int(vmem_limit_bytes)),
    )


def detection_layer_forward(prediction, anchors, input_dim, num_classes,
                            targets=None, ignore_thres=0.5):
    """JAX/Pallas equivalent of DetectionLayer.forward (inference path)."""
    prediction = jnp.asarray(prediction)
    if prediction.dtype not in (jnp.float32, jnp.bfloat16):
        prediction = prediction.astype(jnp.float32)
    io_dtype = prediction.dtype                       # bf16 in -> bf16 out (f32 math)

    B, C, G, G2 = prediction.shape
    assert G == G2
    A = len(anchors)
    P = 5 + num_classes
    assert C == A * P
    stride = float(input_dim // G)
    GG = G * G
    AP = A * P

    # Contiguous NCHW (B, A*P, G, G) -> (B, A*P, G*G) is a free reshape.
    pred = prediction.reshape(B, AP, GG)

    # Compact constants (DMA'd once, VMEM-resident): grid offsets and anchors.
    lane = jnp.arange(GG, dtype=jnp.int32)
    gx = (lane % G).astype(jnp.float32) * stride
    gy = (lane // G).astype(jnp.float32) * stride
    gxy = jnp.stack([gx, gy], axis=0)                                  # (2, GG)
    anc = jnp.asarray(anchors, jnp.float32).reshape(2 * A, 1)          # [w0;h0;w1;h1;...]

    # Generation-aware tiling: physical VMEM -> scoped limit -> batch block.
    itemsize = jnp.dtype(io_dtype).itemsize
    per_image_bytes = 2 * AP * GG * itemsize                           # in block + out block
    vmem_cap = _vmem_capacity_bytes()
    vmem_limit = int(min(vmem_cap // 2, 64 * 1024 * 1024))
    bb = _pick_batch_block(B, per_image_bytes, vmem_limit)

    # Preferred config first; fall back if this jax/libtpu build rejects
    # Buffered(1) constants or the in-kernel (P, GG)->(GG, P) transpose.
    attempts = ((True, True), (True, False), (False, False))
    raw, fused, last_err = None, True, None
    for fuse, buf in attempts:
        try:
            call = _make_decoder(B, A, P, GG, stride, bb, io_dtype,
                                 fuse, buf, vmem_limit)
            raw = jax.block_until_ready(call(pred, gxy, anc))
            fused = fuse
            break
        except Exception as err:            # pragma: no cover - version dependent
            last_err = err
            raw = None
    if raw is None:
        raise last_err

    if fused:
        output = raw                                                     # (B, A*GG, P)
    else:
        # Fallback glue to the PyTorch (B, A*GG, P) layout.
        output = raw.reshape(B, A, P, GG).transpose(0, 1, 3, 2).reshape(B, A * GG, P)

    if targets is None:
        return output, 0
    # TODO(synk): training loss path requires build_targets (not defined in the
    # reference module); only the inference decode is implemented here.
    return output, 0


def _reference(prediction, anchors, input_dim, num_classes):
    """Pure-JAX replica of the PyTorch forward (targets=None path) for checking."""
    prediction = jnp.asarray(prediction, jnp.float32)
    B, C, G, _ = prediction.shape
    A = len(anchors)
    P = 5 + num_classes
    stride = input_dim // G
    pred = prediction.reshape(B, A, P, G, G).transpose(0, 1, 3, 4, 2)
    x = jax.nn.sigmoid(pred[..., 0])
    y = jax.nn.sigmoid(pred[..., 1])
    w = pred[..., 2]
    h = pred[..., 3]
    conf = jax.nn.sigmoid(pred[..., 4])
    cls = jax.nn.sigmoid(pred[..., 5:5 + num_classes])
    grid_x = jnp.arange(G, dtype=jnp.float32).reshape(1, 1, 1, G)
    grid_y = jnp.arange(G, dtype=jnp.float32).reshape(1, 1, G, 1)
    anc = jnp.asarray(anchors, jnp.float32) / float(stride)
    aw = anc[:, 0].reshape(1, A, 1, 1)
    ah = anc[:, 1].reshape(1, A, 1, 1)
    bx = x + grid_x
    by = y + grid_y
    bw = jnp.exp(w) * aw
    bh = jnp.exp(h) * ah
    boxes = jnp.stack([bx, by, bw, bh], axis=-1).reshape(B, -1, 4) * stride
    return jnp.concatenate(
        [boxes, conf.reshape(B, -1, 1), cls.reshape(B, -1, num_classes)], axis=-1)


if __name__ == "__main__":
    # Small, deterministic example consistent with the module:
    # num_classes=3 -> box_para=8, 3 anchors -> 24 channels, grid 16x16, input_dim 64.
    key = jax.random.PRNGKey(0)
    B, num_classes, G, input_dim = 2, 3, 16, 64
    anchors = [(10.0, 13.0), (16.0, 30.0), (33.0, 23.0)]
    A = len(anchors)
    P = 5 + num_classes

    prediction = jax.random.normal(key, (B, A * P, G, G), dtype=jnp.float32)

    out, loss = detection_layer_forward(prediction, anchors, input_dim, num_classes,
                                        targets=None, ignore_thres=0.5)
    out = jax.block_until_ready(out)

    ref = _reference(prediction, anchors, input_dim, num_classes)
    assert out.shape == (B, A * G * G, P), out.shape
    assert jnp.allclose(out, ref, atol=1e-5, rtol=1e-5), float(jnp.max(jnp.abs(out - ref)))
    assert loss == 0

    print("KERNEL_OK")
</pallas_src>

<mosaic_0001>
module attributes {stable_mosaic.version = 11 : i64} {
  func.func @kernel(%arg0: i32, %arg1: memref<1x24x256xf32, #tpu.memory_space<vmem>>, %arg2: memref<2x256xf32, #tpu.memory_space<vmem>>, %arg3: memref<6x1xf32, #tpu.memory_space<vmem>>, %arg4: memref<1x768x8xf32, #tpu.memory_space<vmem>>, %arg5: memref<8x256xf32, #tpu.memory_space<vmem>>) attributes {dimension_semantics = [#tpu.dimension_semantics<parallel>], iteration_bounds = array<i64: 2>, scalar_prefetch = 0 : i64, scratch_operands = 1 : i64, tpu.core_type = #tpu.core_type<tc>, window_params = [{transform_indices = @transform_0, window_bounds = array<i64: 1, 24, 256>}, {pipeline_mode = #tpu.pipeline_mode<synchronous>, transform_indices = @transform_1, window_bounds = array<i64: 2, 256>}, {pipeline_mode = #tpu.pipeline_mode<synchronous>, transform_indices = @transform_2, window_bounds = array<i64: 6, 1>}, {transform_indices = @transform_3, window_bounds = array<i64: 1, 768, 8>}]} {
    %c0 = arith.constant 0 : index
    %c0_0 = arith.constant 0 : index
    %0 = vector.load %arg2[%c0, %c0_0] : memref<2x256xf32, #tpu.memory_space<vmem>>, vector<2x256xf32>
    %c0_1 = arith.constant 0 : index
    %c0_2 = arith.constant 0 : index
    %c0_3 = arith.constant 0 : index
    %1 = vector.load %arg1[%c0_1, %c0_2, %c0_3] : memref<1x24x256xf32, #tpu.memory_space<vmem>>, vector<1x2x256xf32>
    %2 = vector.shape_cast %1 : vector<1x2x256xf32> to vector<2x256xf32>
    %c0_4 = arith.constant 0 : index
    %c2 = arith.constant 2 : index
    %c0_5 = arith.constant 0 : index
    %3 = vector.load %arg1[%c0_4, %c2, %c0_5] : memref<1x24x256xf32, #tpu.memory_space<vmem>>, vector<1x2x256xf32>
    %4 = vector.shape_cast %3 : vector<1x2x256xf32> to vector<2x256xf32>
    %c0_6 = arith.constant 0 : index
    %c4 = arith.constant 4 : index
    %c0_7 = arith.constant 0 : index
    %5 = vector.load %arg1[%c0_6, %c4, %c0_7] : memref<1x24x256xf32, #tpu.memory_space<vmem>>, vector<1x4x256xf32>
    %6 = vector.shape_cast %5 : vector<1x4x256xf32> to vector<4x256xf32>
    %7 = arith.negf %2 : vector<2x256xf32>
    %8 = math.exp %7 : vector<2x256xf32>
    %cst = arith.constant 1.000000e+00 : f32
    %9 = vector.broadcast %cst : f32 to vector<2x256xf32>
    %10 = arith.addf %9, %8 : vector<2x256xf32>
    %11 = arith.divf %9, %10 : vector<2x256xf32>
    %cst_8 = arith.constant 4.000000e+00 : f32
    %12 = vector.broadcast %cst_8 : f32 to vector<2x256xf32>
    %13 = arith.mulf %11, %12 : vector<2x256xf32>
    %14 = arith.addf %13, %0 : vector<2x256xf32>
    %15 = math.exp %4 : vector<2x256xf32>
    %c0_9 = arith.constant 0 : index
    %c0_10 = arith.constant 0 : index
    %16 = vector.load %arg3[%c0_9, %c0_10] : memref<6x1xf32, #tpu.memory_space<vmem>>, vector<2x1xf32>
    %17 = vector.broadcast %16 : vector<2x1xf32> to vector<2x256xf32>
    %18 = arith.mulf %15, %17 : vector<2x256xf32>
    %19 = arith.negf %6 : vector<4x256xf32>
    %20 = math.exp %19 : vector<4x256xf32>
    %cst_11 = arith.constant 1.000000e+00 : f32
    %21 = vector.broadcast %cst_11 : f32 to vector<4x256xf32>
    %22 = arith.addf %21, %20 : vector<4x256xf32>
    %23 = arith.divf %21, %22 : vector<4x256xf32>
    %c0_12 = arith.constant 0 : index
    %c0_13 = arith.constant 0 : index
    %24 = vector.load %arg5[%c0_12, %c0_13] : memref<8x256xf32, #tpu.memory_space<vmem>>, vector<2x256xf32>
    tpu.vector_store %arg5[%c0_12, %c0_13], %14 {strides = array<i32>} : memref<8x256xf32, #tpu.memory_space<vmem>>, vector<2x256xf32>,
    %c2_14 = arith.constant 2 : index
    %c0_15 = arith.constant 0 : index
    %25 = vector.load %arg5[%c2_14, %c0_15] : memref<8x256xf32, #tpu.memory_space<vmem>>, vector<2x256xf32>
    tpu.vector_store %arg5[%c2_14, %c0_15], %18 {strides = array<i32>} : memref<8x256xf32, #tpu.memory_space<vmem>>, vector<2x256xf32>,
    %c4_16 = arith.constant 4 : index
    %c0_17 = arith.constant 0 : index
    %26 = vector.load %arg5[%c4_16, %c0_17] : memref<8x256xf32, #tpu.memory_space<vmem>>, vector<4x256xf32>
    tpu.vector_store %arg5[%c4_16, %c0_17], %23 {strides = array<i32>} : memref<8x256xf32, #tpu.memory_space<vmem>>, vector<4x256xf32>,
    %c0_18 = arith.constant 0 : index
    %c0_19 = arith.constant 0 : index
    %27 = vector.load %arg5[%c0_18, %c0_19] : memref<8x256xf32, #tpu.memory_space<vmem>>, vector<8x256xf32>
    %28 = tpu.transpose %27, [1, 0] : vector<8x256xf32> -> vector<256x8xf32>
    %c0_20 = arith.constant 0 : index
    %c0_21 = arith.constant 0 : index
    %c0_22 = arith.constant 0 : index
    %29 = vector.load %arg4[%c0_20, %c0_21, %c0_22] : memref<1x768x8xf32, #tpu.memory_space<vmem>>, vector<1x256x8xf32>
    %30 = vector.shape_cast %29 : vector<1x256x8xf32> to vector<256x8xf32>
    %31 = vector.shape_cast %28 : vector<256x8xf32> to vector<1x256x8xf32>
    tpu.vector_store %arg4[%c0_20, %c0_21, %c0_22], %31 {strides = array<i32>} : memref<1x768x8xf32, #tpu.memory_space<vmem>>, vector<1x256x8xf32>,
    %c0_23 = arith.constant 0 : index
    %c8 = arith.constant 8 : index
    %c0_24 = arith.constant 0 : index
    %32 = vector.load %arg1[%c0_23, %c8, %c0_24] : memref<1x24x256xf32, #tpu.memory_space<vmem>>, vector<1x2x256xf32>
    %33 = vector.shape_cast %32 : vector<1x2x256xf32> to vector<2x256xf32>
    %c0_25 = arith.constant 0 : index
    %c10 = arith.constant 10 : index
    %c0_26 = arith.constant 0 : index
    %34 = vector.load %arg1[%c0_25, %c10, %c0_26] : memref<1x24x256xf32, #tpu.memory_space<vmem>>, vector<1x2x256xf32>
    %35 = vector.shape_cast %34 : vector<1x2x256xf32> to vector<2x256xf32>
    %c0_27 = arith.constant 0 : index
    %c12 = arith.constant 12 : index
    %c0_28 = arith.constant 0 : index
    %36 = vector.load %arg1[%c0_27, %c12, %c0_28] : memref<1x24x256xf32, #tpu.memory_space<vmem>>, vector<1x4x256xf32>
    %37 = vector.shape_cast %36 : vector<1x4x256xf32> to vector<4x256xf32>
    %38 = arith.negf %33 : vector<2x256xf32>
    %39 = math.exp %38 : vector<2x256xf32>
    %cst_29 = arith.constant 1.000000e+00 : f32
    %40 = vector.broadcast %cst_29 : f32 to vector<2x256xf32>
    %41 = arith.addf %40, %39 : vector<2x256xf32>
    %42 = arith.divf %40, %41 : vector<2x256xf32>
    %cst_30 = arith.constant 4.000000e+00 : f32
    %43 = vector.broadcast %cst_30 : f32 to vector<2x256xf32>
    %44 = arith.mulf %42, %43 : vector<2x256xf32>
    %45 = arith.addf %44, %0 : vector<2x256xf32>
    %46 = math.exp %35 : vector<2x256xf32>
    %c2_31 = arith.constant 2 : index
    %c0_32 = arith.constant 0 : index
    %47 = vector.load %arg3[%c2_31, %c0_32] : memref<6x1xf32, #tpu.memory_space<vmem>>, vector<2x1xf32>
    %48 = vector.broadcast %47 : vector<2x1xf32> to vector<2x256xf32>
    %49 = arith.mulf %46, %48 : vector<2x256xf32>
    %50 = arith.negf %37 : vector<4x256xf32>
    %51 = math.exp %50 : vector<4x256xf32>
    %cst_33 = arith.constant 1.000000e+00 : f32
    %52 = vector.broadcast %cst_33 : f32 to vector<4x256xf32>
    %53 = arith.addf %52, %51 : vector<4x256xf32>
    %54 = arith.divf %52, %53 : vector<4x256xf32>
    %c0_34 = arith.constant 0 : index
    %c0_35 = arith.constant 0 : index
    %55 = vector.load %arg5[%c0_34, %c0_35] : memref<8x256xf32, #tpu.memory_space<vmem>>, vector<2x256xf32>
    tpu.vector_store %arg5[%c0_34, %c0_35], %45 {strides = array<i32>} : memref<8x256xf32, #tpu.memory_space<vmem>>, vector<2x256xf32>,
    %c2_36 = arith.constant 2 : index
    %c0_37 = arith.constant 0 : index
    %56 = vector.load %arg5[%c2_36, %c0_37] : memref<8x256xf32, #tpu.memory_space<vmem>>, vector<2x256xf32>
    tpu.vector_store %arg5[%c2_36, %c0_37], %49 {strides = array<i32>} : memref<8x256xf32, #tpu.memory_space<vmem>>, vector<2x256xf32>,
    %c4_38 = arith.constant 4 : index
    %c0_39 = arith.constant 0 : index
    %57 = vector.load %arg5[%c4_38, %c0_39] : memref<8x256xf32, #tpu.memory_space<vmem>>, vector<4x256xf32>
    tpu.vector_store %arg5[%c4_38, %c0_39], %54 {strides = array<i32>} : memref<8x256xf32, #tpu.memory_space<vmem>>, vector<4x256xf32>,
    %c0_40 = arith.constant 0 : index
    %c0_41 = arith.constant 0 : index
    %58 = vector.load %arg5[%c0_40, %c0_41] : memref<8x256xf32, #tpu.memory_space<vmem>>, vector<8x256xf32>
    %59 = tpu.transpose %58, [1, 0] : vector<8x256xf32> -> vector<256x8xf32>
    %c0_42 = arith.constant 0 : index
    %c256 = arith.constant 256 : index
    %c0_43 = arith.constant 0 : index
    %60 = vector.load %arg4[%c0_42, %c256, %c0_43] : memref<1x768x8xf32, #tpu.memory_space<vmem>>, vector<1x256x8xf32>
    %61 = vector.shape_cast %60 : vector<1x256x8xf32> to vector<256x8xf32>
    %62 = vector.shape_cast %59 : vector<256x8xf32> to vector<1x256x8xf32>
    tpu.vector_store %arg4[%c0_42, %c256, %c0_43], %62 {strides = array<i32>} : memref<1x768x8xf32, #tpu.memory_space<vmem>>, vector<1x256x8xf32>,
    %c0_44 = arith.constant 0 : index
    %c16 = arith.constant 16 : index
    %c0_45 = arith.constant 0 : index
    %63 = vector.load %arg1[%c0_44, %c16, %c0_45] : memref<1x24x256xf32, #tpu.memory_space<vmem>>, vector<1x2x256xf32>
    %64 = vector.shape_cast %63 : vector<1x2x256xf32> to vector<2x256xf32>
    %c0_46 = arith.constant 0 : index
    %c18 = arith.constant 18 : index
    %c0_47 = arith.constant 0 : index
    %65 = vector.load %arg1[%c0_46, %c18, %c0_47] : memref<1x24x256xf32, #tpu.memory_space<vmem>>, vector<1x2x256xf32>
    %66 = vector.shape_cast %65 : vector<1x2x256xf32> to vector<2x256xf32>
    %c0_48 = arith.constant 0 : index
    %c20 = arith.constant 20 : index
    %c0_49 = arith.constant 0 : index
    %67 = vector.load %arg1[%c0_48, %c20, %c0_49] : memref<1x24x256xf32, #tpu.memory_space<vmem>>, vector<1x4x256xf32>
    %68 = vector.shape_cast %67 : vector<1x4x256xf32> to vector<4x256xf32>
    %69 = arith.negf %64 : vector<2x256xf32>
    %70 = math.exp %69 : vector<2x256xf32>
    %cst_50 = arith.constant 1.000000e+00 : f32
    %71 = vector.broadcast %cst_50 : f32 to vector<2x256xf32>
    %72 = arith.addf %71, %70 : vector<2x256xf32>
    %73 = arith.divf %71, %72 : vector<2x256xf32>
    %cst_51 = arith.constant 4.000000e+00 : f32
    %74 = vector.broadcast %cst_51 : f32 to vector<2x256xf32>
    %75 = arith.mulf %73, %74 : vector<2x256xf32>
    %76 = arith.addf %75, %0 : vector<2x256xf32>
    %77 = math.exp %66 : vector<2x256xf32>
    %c4_52 = arith.constant 4 : index
    %c0_53 = arith.constant 0 : index
    %78 = vector.load %arg3[%c4_52, %c0_53] : memref<6x1xf32, #tpu.memory_space<vmem>>, vector<2x1xf32>
    %79 = vector.broadcast %78 : vector<2x1xf32> to vector<2x256xf32>
    %80 = arith.mulf %77, %79 : vector<2x256xf32>
    %81 = arith.negf %68 : vector<4x256xf32>
    %82 = math.exp %81 : vector<4x256xf32>
    %cst_54 = arith.constant 1.000000e+00 : f32
    %83 = vector.broadcast %cst_54 : f32 to vector<4x256xf32>
    %84 = arith.addf %83, %82 : vector<4x256xf32>
    %85 = arith.divf %83, %84 : vector<4x256xf32>
    %c0_55 = arith.constant 0 : index
    %c0_56 = arith.constant 0 : index
    %86 = vector.load %arg5[%c0_55, %c0_56] : memref<8x256xf32, #tpu.memory_space<vmem>>, vector<2x256xf32>
    tpu.vector_store %arg5[%c0_55, %c0_56], %76 {strides = array<i32>} : memref<8x256xf32, #tpu.memory_space<vmem>>, vector<2x256xf32>,
    %c2_57 = arith.constant 2 : index
    %c0_58 = arith.constant 0 : index
    %87 = vector.load %arg5[%c2_57, %c0_58] : memref<8x256xf32, #tpu.memory_space<vmem>>, vector<2x256xf32>
    tpu.vector_store %arg5[%c2_57, %c0_58], %80 {strides = array<i32>} : memref<8x256xf32, #tpu.memory_space<vmem>>, vector<2x256xf32>,
    %c4_59 = arith.constant 4 : index
    %c0_60 = arith.constant 0 : index
    %88 = vector.load %arg5[%c4_59, %c0_60] : memref<8x256xf32, #tpu.memory_space<vmem>>, vector<4x256xf32>
    tpu.vector_store %arg5[%c4_59, %c0_60], %85 {strides = array<i32>} : memref<8x256xf32, #tpu.memory_space<vmem>>, vector<4x256xf32>,
    %c0_61 = arith.constant 0 : index
    %c0_62 = arith.constant 0 : index
    %89 = vector.load %arg5[%c0_61, %c0_62] : memref<8x256xf32, #tpu.memory_space<vmem>>, vector<8x256xf32>
    %90 = tpu.transpose %89, [1, 0] : vector<8x256xf32> -> vector<256x8xf32>
    %c0_63 = arith.constant 0 : index
    %c512 = arith.constant 512 : index
    %c0_64 = arith.constant 0 : index
    %91 = vector.load %arg4[%c0_63, %c512, %c0_64] : memref<1x768x8xf32, #tpu.memory_space<vmem>>, vector<1x256x8xf32>
    %92 = vector.shape_cast %91 : vector<1x256x8xf32> to vector<256x8xf32>
    %93 = vector.shape_cast %90 : vector<256x8xf32> to vector<1x256x8xf32>
    tpu.vector_store %arg4[%c0_63, %c512, %c0_64], %93 {strides = array<i32>} : memref<1x768x8xf32, #tpu.memory_space<vmem>>, vector<1x256x8xf32>,
    return
  }
  func.func @transform_0(%arg0: i32) -> (i32, i32, i32) {
    %c0_i32 = arith.constant 0 : i32
    %c0_i32_0 = arith.constant 0 : i32
    %c0_i32_1 = arith.constant 0 : i32
    return %arg0, %c0_i32, %c0_i32_0 : i32, i32, i32
  }
  func.func @transform_1(%arg0: i32) -> (i32, i32) {
    %c0_i32 = arith.constant 0 : i32
    %c0_i32_0 = arith.constant 0 : i32
    %c0_i32_1 = arith.constant 0 : i32
    return %c0_i32, %c0_i32_0 : i32, i32
  }
  func.func @transform_2(%arg0: i32) -> (i32, i32) {
    %c0_i32 = arith.constant 0 : i32
    %c0_i32_0 = arith.constant 0 : i32
    %c0_i32_1 = arith.constant 0 : i32
    return %c0_i32, %c0_i32_0 : i32, i32
  }
  func.func @transform_3(%arg0: i32) -> (i32, i32, i32) {
    %c0_i32 = arith.constant 0 : i32
    %c0_i32_0 = arith.constant 0 : i32
    %c0_i32_1 = arith.constant 0 : i32
    return %arg0, %c0_i32, %c0_i32_0 : i32, i32, i32
  }
}

module attributes {stable_mosaic.version = 11 : i64} {
  func.func @kernel(%arg0: i32, %arg1: memref<1x24x256xf32, #tpu.memory_space<vmem>>, %arg2: memref<2x256xf32, #tpu.memory_space<vmem>>, %arg3: memref<6x1xf32, #tpu.memory_space<vmem>>, %arg4: memref<1x768x8xf32, #tpu.memory_space<vmem>>, %arg5: memref<8x256xf32, #tpu.memory_space<vmem>>) attributes {dimension_semantics = [#tpu.dimension_semantics<parallel>], iteration_bounds = array<i64: 2>, scalar_prefetch = 0 : i64, scratch_operands = 1 : i64, tpu.core_type = #tpu.core_type<tc>, window_params = [{transform_indices = @transform_0, window_bounds = array<i64: 1, 24, 256>}, {pipeline_mode = #tpu.pipeline_mode<synchronous>, transform_indices = @transform_1, window_bounds = array<i64: 2, 256>}, {pipeline_mode = #tpu.pipeline_mode<synchronous>, transform_indices = @transform_2, window_bounds = array<i64: 6, 1>}, {transform_indices = @transform_3, window_bounds = array<i64: 1, 768, 8>}]} {
    %c0 = arith.constant 0 : index
    %c0_0 = arith.constant 0 : index
    %0 = vector.load %arg2[%c0, %c0_0] : memref<2x256xf32, #tpu.memory_space<vmem>>, vector<2x256xf32>
    %c0_1 = arith.constant 0 : index
    %c0_2 = arith.constant 0 : index
    %c0_3 = arith.constant 0 : index
    %1 = vector.load %arg1[%c0_1, %c0_2, %c0_3] : memref<1x24x256xf32, #tpu.memory_space<vmem>>, vector<1x2x256xf32>
    %2 = vector.shape_cast %1 : vector<1x2x256xf32> to vector<2x256xf32>
    %c0_4 = arith.constant 0 : index
    %c2 = arith.constant 2 : index
    %c0_5 = arith.constant 0 : index
    %3 = vector.load %arg1[%c0_4, %c2, %c0_5] : memref<1x24x256xf32, #tpu.memory_space<vmem>>, vector<1x2x256xf32>
    %4 = vector.shape_cast %3 : vector<1x2x256xf32> to vector<2x256xf32>
    %c0_6 = arith.constant 0 : index
    %c4 = arith.constant 4 : index
    %c0_7 = arith.constant 0 : index
    %5 = vector.load %arg1[%c0_6, %c4, %c0_7] : memref<1x24x256xf32, #tpu.memory_space<vmem>>, vector<1x4x256xf32>
    %6 = vector.shape_cast %5 : vector<1x4x256xf32> to vector<4x256xf32>
    %7 = arith.negf %2 : vector<2x256xf32>
    %8 = math.exp %7 : vector<2x256xf32>
    %cst = arith.constant 1.000000e+00 : f32
    %9 = vector.broadcast %cst : f32 to vector<2x256xf32>
    %10 = arith.addf %9, %8 : vector<2x256xf32>
    %11 = arith.divf %9, %10 : vector<2x256xf32>
    %cst_8 = arith.constant 4.000000e+00 : f32
    %12 = vector.broadcast %cst_8 : f32 to vector<2x256xf32>
    %13 = arith.mulf %11, %12 : vector<2x256xf32>
    %14 = arith.addf %13, %0 : vector<2x256xf32>
    %15 = math.exp %4 : vector<2x256xf32>
    %c0_9 = arith.constant 0 : index
    %c0_10 = arith.constant 0 : index
    %16 = vector.load %arg3[%c0_9, %c0_10] : memref<6x1xf32, #tpu.memory_space<vmem>>, vector<2x1xf32>
    %17 = vector.broadcast %16 : vector<2x1xf32> to vector<2x256xf32>
    %18 = arith.mulf %15, %17 : vector<2x256xf32>
    %19 = arith.negf %6 : vector<4x256xf32>
    %20 = math.exp %19 : vector<4x256xf32>
    %cst_11 = arith.constant 1.000000e+00 : f32
    %21 = vector.broadcast %cst_11 : f32 to vector<4x256xf32>
    %22 = arith.addf %21, %20 : vector<4x256xf32>
    %23 = arith.divf %21, %22 : vector<4x256xf32>
    %c0_12 = arith.constant 0 : index
    %c0_13 = arith.constant 0 : index
    %24 = vector.load %arg5[%c0_12, %c0_13] : memref<8x256xf32, #tpu.memory_space<vmem>>, vector<2x256xf32>
    tpu.vector_store %arg5[%c0_12, %c0_13], %14 {strides = array<i32>} : memref<8x256xf32, #tpu.memory_space<vmem>>, vector<2x256xf32>,
    %c2_14 = arith.constant 2 : index
    %c0_15 = arith.constant 0 : index
    %25 = vector.load %arg5[%c2_14, %c0_15] : memref<8x256xf32, #tpu.memory_space<vmem>>, vector<2x256xf32>
    tpu.vector_store %arg5[%c2_14, %c0_15], %18 {strides = array<i32>} : memref<8x256xf32, #tpu.memory_space<vmem>>, vector<2x256xf32>,
    %c4_16 = arith.constant 4 : index
    %c0_17 = arith.constant 0 : index
    %26 = vector.load %arg5[%c4_16, %c0_17] : memref<8x256xf32, #tpu.memory_space<vmem>>, vector<4x256xf32>
    tpu.vector_store %arg5[%c4_16, %c0_17], %23 {strides = array<i32>} : memref<8x256xf32, #tpu.memory_space<vmem>>, vector<4x256xf32>,
    %c0_18 = arith.constant 0 : index
    %c0_19 = arith.constant 0 : index
    %27 = vector.load %arg5[%c0_18, %c0_19] : memref<8x256xf32, #tpu.memory_space<vmem>>, vector<8x256xf32>
    %28 = tpu.transpose %27, [1, 0] : vector<8x256xf32> -> vector<256x8xf32>
    %c0_20 = arith.constant 0 : index
    %c0_21 = arith.constant 0 : index
    %c0_22 = arith.constant 0 : index
    %29 = vector.load %arg4[%c0_20, %c0_21, %c0_22] : memref<1x768x8xf32, #tpu.memory_space<vmem>>, vector<1x256x8xf32>
    %30 = vector.shape_cast %29 : vector<1x256x8xf32> to vector<256x8xf32>
    %31 = vector.shape_cast %28 : vector<256x8xf32> to vector<1x256x8xf32>
    tpu.vector_store %arg4[%c0_20, %c0_21, %c0_22], %31 {strides = array<i32>} : memref<1x768x8xf32, #tpu.memory_space<vmem>>, vector<1x256x8xf32>,
    %c0_23 = arith.constant 0 : index
    %c8 = arith.constant 8 : index
    %c0_24 = arith.constant 0 : index
    %32 = vector.load %arg1[%c0_23, %c8, %c0_24] : memref<1x24x256xf32, #tpu.memory_space<vmem>>, vector<1x2x256xf32>
    %33 = vector.shape_cast %32 : vector<1x2x256xf32> to vector<2x256xf32>
    %c0_25 = arith.constant 0 : index
    %c10 = arith.constant 10 : index
    %c0_26 = arith.constant 0 : index
    %34 = vector.load %arg1[%c0_25, %c10, %c0_26] : memref<1x24x256xf32, #tpu.memory_space<vmem>>, vector<1x2x256xf32>
    %35 = vector.shape_cast %34 : vector<1x2x256xf32> to vector<2x256xf32>
    %c0_27 = arith.constant 0 : index
    %c12 = arith.constant 12 : index
    %c0_28 = arith.constant 0 : index
    %36 = vector.load %arg1[%c0_27, %c12, %c0_28] : memref<1x24x256xf32, #tpu.memory_space<vmem>>, vector<1x4x256xf32>
    %37 = vector.shape_cast %36 : vector<1x4x256xf32> to vector<4x256xf32>
    %38 = arith.negf %33 : vector<2x256xf32>
    %39 = math.exp %38 : vector<2x256xf32>
    %cst_29 = arith.constant 1.000000e+00 : f32
    %40 = vector.broadcast %cst_29 : f32 to vector<2x256xf32>
    %41 = arith.addf %40, %39 : vector<2x256xf32>
    %42 = arith.divf %40, %41 : vector<2x256xf32>
    %cst_30 = arith.constant 4.000000e+00 : f32
    %43 = vector.broadcast %cst_30 : f32 to vector<2x256xf32>
    %44 = arith.mulf %42, %43 : vector<2x256xf32>
    %45 = arith.addf %44, %0 : vector<2x256xf32>
    %46 = math.exp %35 : vector<2x256xf32>
    %c2_31 = arith.constant 2 : index
    %c0_32 = arith.constant 0 : index
    %47 = vector.load %arg3[%c2_31, %c0_32] : memref<6x1xf32, #tpu.memory_space<vmem>>, vector<2x1xf32>
    %48 = vector.broadcast %47 : vector<2x1xf32> to vector<2x256xf32>
    %49 = arith.mulf %46, %48 : vector<2x256xf32>
    %50 = arith.negf %37 : vector<4x256xf32>
    %51 = math.exp %50 : vector<4x256xf32>
    %cst_33 = arith.constant 1.000000e+00 : f32
    %52 = vector.broadcast %cst_33 : f32 to vector<4x256xf32>
    %53 = arith.addf %52, %51 : vector<4x256xf32>
    %54 = arith.divf %52, %53 : vector<4x256xf32>
    %c0_34 = arith.constant 0 : index
    %c0_35 = arith.constant 0 : index
    %55 = vector.load %arg5[%c0_34, %c0_35] : memref<8x256xf32, #tpu.memory_space<vmem>>, vector<2x256xf32>
    tpu.vector_store %arg5[%c0_34, %c0_35], %45 {strides = array<i32>} : memref<8x256xf32, #tpu.memory_space<vmem>>, vector<2x256xf32>,
    %c2_36 = arith.constant 2 : index
    %c0_37 = arith.constant 0 : index
    %56 = vector.load %arg5[%c2_36, %c0_37] : memref<8x256xf32, #tpu.memory_space<vmem>>, vector<2x256xf32>
    tpu.vector_store %arg5[%c2_36, %c0_37], %49 {strides = array<i32>} : memref<8x256xf32, #tpu.memory_space<vmem>>, vector<2x256xf32>,
    %c4_38 = arith.constant 4 : index
    %c0_39 = arith.constant 0 : index
    %57 = vector.load %arg5[%c4_38, %c0_39] : memref<8x256xf32, #tpu.memory_space<vmem>>, vector<4x256xf32>
    tpu.vector_store %arg5[%c4_38, %c0_39], %54 {strides = array<i32>} : memref<8x256xf32, #tpu.memory_space<vmem>>, vector<4x256xf32>,
    %c0_40 = arith.constant 0 : index
    %c0_41 = arith.constant 0 : index
    %58 = vector.load %arg5[%c0_40, %c0_41] : memref<8x256xf32, #tpu.memory_space<vmem>>, vector<8x256xf32>
    %59 = tpu.transpose %58, [1, 0] : vector<8x256xf32> -> vector<256x8xf32>
    %c0_42 = arith.constant 0 : index
    %c256 = arith.constant 256 : index
    %c0_43 = arith.constant 0 : index
    %60 = vector.load %arg4[%c0_42, %c256, %c0_43] : memref<1x768x8xf32, #tpu.memory_space<vmem>>, vector<1x256x8xf32>
    %61 = vector.shape_cast %60 : vector<1x256x8xf32> to vector<256x8xf32>
    %62 = vector.shape_cast %59 : vector<256x8xf32> to vector<1x256x8xf32>
    tpu.vector_store %arg4[%c0_42, %c256, %c0_43], %62 {strides = array<i32>} : memref<1x768x8xf32, #tpu.memory_space<vmem>>, vector<1x256x8xf32>,
    %c0_44 = arith.constant 0 : index
    %c16 = arith.constant 16 : index
    %c0_45 = arith.constant 0 : index
    %63 = vector.load %arg1[%c0_44, %c16, %c0_45] : memref<1x24x256xf32, #tpu.memory_space<vmem>>, vector<1x2x256xf32>
    %64 = vector.shape_cast %63 : vector<1x2x256xf32> to vector<2x256xf32>
    %c0_46 = arith.constant 0 : index
    %c18 = arith.constant 18 : index
    %c0_47 = arith.constant 0 : index
    %65 = vector.load %arg1[%c0_46, %c18, %c0_47] : memref<1x24x256xf32, #tpu.memory_space<vmem>>, vector<1x2x256xf32>
    %66 = vector.shape_cast %65 : vector<1x2x256xf32> to vector<2x256xf32>
    %c0_48 = arith.constant 0 : index
    %c20 = arith.constant 20 : index
    %c0_49 = arith.constant 0 : index
    %67 = vector.load %arg1[%c0_48, %c20, %c0_49] : memref<1x24x256xf32, #tpu.memory_space<vmem>>, vector<1x4x256xf32>
    %68 = vector.shape_cast %67 : vector<1x4x256xf32> to vector<4x256xf32>
    %69 = arith.negf %64 : vector<2x256xf32>
    %70 = math.exp %69 : vector<2x256xf32>
    %cst_50 = arith.constant 1.000000e+00 : f32
    %71 = vector.broadcast %cst_50 : f32 to vector<2x256xf32>
    %72 = arith.addf %71, %70 : vector<2x256xf32>
    %73 = arith.divf %71, %72 : vector<2x256xf32>
    %cst_51 = arith.constant 4.000000e+00 : f32
    %74 = vector.broadcast %cst_51 : f32 to vector<2x256xf32>
    %75 = arith.mulf %73, %74 : vector<2x256xf32>
    %76 = arith.addf %75, %0 : vector<2x256xf32>
    %77 = math.exp %66 : vector<2x256xf32>
    %c4_52 = arith.constant 4 : index
    %c0_53 = arith.constant 0 : index
    %78 = vector.load %arg3[%c4_52, %c0_53] : memref<6x1xf32, #tpu.memory_space<vmem>>, vector<2x1xf32>
    %79 = vector.broadcast %78 : vector<2x1xf32> to vector<2x256xf32>
    %80 = arith.mulf %77, %79 : vector<2x256xf32>
    %81 = arith.negf %68 : vector<4x256xf32>
    %82 = math.exp %81 : vector<4x256xf32>
    %cst_54 = arith.constant 1.000000e+00 : f32
    %83 = vector.broadcast %cst_54 : f32 to vector<4x256xf32>
    %84 = arith.addf %83, %82 : vector<4x256xf32>
    %85 = arith.divf %83, %84 : vector<4x256xf32>
    %c0_55 = arith.constant 0 : index
    %c0_56 = arith.constant 0 : index
    %86 = vector.load %arg5[%c0_55, %c0_56] : memref<8x256xf32, #tpu.memory_space<vmem>>, vector<2x256xf32>
    tpu.vector_store %arg5[%c0_55, %c0_56], %76 {strides = array<i32>} : memref<8x256xf32, #tpu.memory_space<vmem>>, vector<2x256xf32>,
    %c2_57 = arith.constant 2 : index
    %c0_58 = arith.constant 0 : index
    %87 = vector.load %arg5[%c2_57, %c0_58] : memref<8x256xf32, #tpu.memory_space<vmem>>, vector<2x256xf32>
    tpu.vector_store %arg5[%c2_57, %c0_58], %80 {strides = array<i32>} : memref<8x256xf32, #tpu.memory_space<vmem>>, vector<2x256xf32>,
    %c4_59 = arith.constant 4 : index
    %c0_60 = arith.constant 0 : index
    %88 = vector.load %arg5[%c4_59, %c0_60] : memref<8x256xf32, #tpu.memory_space<vmem>>, vector<4x256xf32>
    tpu.vector_store %arg5[%c4_59, %c0_60], %85 {strides = array<i32>} : memref<8x256xf32, #tpu.memory_space<vmem>>, vector<4x256xf32>,
    %c0_61 = arith.constant 0 : index
    %c0_62 = arith.constant 0 : index
    %89 = vector.load %arg5[%c0_61, %c0_62] : memref<8x256xf32, #tpu.memory_space<vmem>>, vector<8x256xf32>
    %90 = tpu.transpose %89, [1, 0] : vector<8x256xf32> -> vector<256x8xf32>
    %c0_63 = arith.constant 0 : index
    %c512 = arith.constant 512 : index
    %c0_64 = arith.constant 0 : index
    %91 = vector.load %arg4[%c0_63, %c512, %c0_64] : memref<1x768x8xf32, #tpu.memory_space<vmem>>, vector<1x256x8xf32>
    %92 = vector.shape_cast %91 : vector<1x256x8xf32> to vector<256x8xf32>
    %93 = vector.shape_cast %90 : vector<256x8xf32> to vector<1x256x8xf32>
    tpu.vector_store %arg4[%c0_63, %c512, %c0_64], %93 {strides = array<i32>} : memref<1x768x8xf32, #tpu.memory_space<vmem>>, vector<1x256x8xf32>,
    return
  }
  func.func @transform_0(%arg0: i32) -> (i32, i32, i32) {
    %c0_i32 = arith.constant 0 : i32
    %c0_i32_0 = arith.constant 0 : i32
    %c0_i32_1 = arith.constant 0 : i32
    return %arg0, %c0_i32, %c0_i32_0 : i32, i32, i32
  }
  func.func @transform_1(%arg0: i32) -> (i32, i32) {
    %c0_i32 = arith.constant 0 : i32
    %c0_i32_0 = arith.constant 0 : i32
    %c0_i32_1 = arith.constant 0 : i32
    return %c0_i32, %c0_i32_0 : i32, i32
  }
  func.func @transform_2(%arg0: i32) -> (i32, i32) {
    %c0_i32 = arith.constant 0 : i32
    %c0_i32_0 = arith.constant 0 : i32
    %c0_i32_1 = arith.constant 0 : i32
    return %c0_i32, %c0_i32_0 : i32, i32
  }
  func.func @transform_3(%arg0: i32) -> (i32, i32, i32) {
    %c0_i32 = arith.constant 0 : i32
    %c0_i32_0 = arith.constant 0 : i32
    %c0_i32_1 = arith.constant 0 : i32
    return %arg0, %c0_i32, %c0_i32_0 : i32, i32, i32
  }
}

module attributes {stable_mosaic.version = 11 : i64} {
  func.func @kernel(%arg0: i32, %arg1: memref<1x24x256xf32, #tpu.memory_space<vmem>>, %arg2: memref<2x256xf32, #tpu.memory_space<vmem>>, %arg3: memref<6x1xf32, #tpu.memory_space<vmem>>, %arg4: memref<1x24x256xf32, #tpu.memory_space<vmem>>) attributes {dimension_semantics = [#tpu.dimension_semantics<parallel>], iteration_bounds = array<i64: 2>, scalar_prefetch = 0 : i64, scratch_operands = 0 : i64, tpu.core_type = #tpu.core_type<tc>, window_params = [{transform_indices = @transform_0, window_bounds = array<i64: 1, 24, 256>}, {pipeline_mode = #tpu.pipeline_mode<synchronous>, transform_indices = @transform_1, window_bounds = array<i64: 2, 256>}, {pipeline_mode = #tpu.pipeline_mode<synchronous>, transform_indices = @transform_2, window_bounds = array<i64: 6, 1>}, {transform_indices = @transform_3, window_bounds = array<i64: 1, 24, 256>}]} {
    %c0 = arith.constant 0 : index
    %c0_0 = arith.constant 0 : index
    %0 = vector.load %arg2[%c0, %c0_0] : memref<2x256xf32, #tpu.memory_space<vmem>>, vector<2x256xf32>
    %c0_1 = arith.constant 0 : index
    %c0_2 = arith.constant 0 : index
    %c0_3 = arith.constant 0 : index
    %1 = vector.load %arg1[%c0_1, %c0_2, %c0_3] : memref<1x24x256xf32, #tpu.memory_space<vmem>>, vector<1x2x256xf32>
    %2 = vector.shape_cast %1 : vector<1x2x256xf32> to vector<2x256xf32>
    %c0_4 = arith.constant 0 : index
    %c2 = arith.constant 2 : index
    %c0_5 = arith.constant 0 : index
    %3 = vector.load %arg1[%c0_4, %c2, %c0_5] : memref<1x24x256xf32, #tpu.memory_space<vmem>>, vector<1x2x256xf32>
    %4 = vector.shape_cast %3 : vector<1x2x256xf32> to vector<2x256xf32>
    %c0_6 = arith.constant 0 : index
    %c4 = arith.constant 4 : index
    %c0_7 = arith.constant 0 : index
    %5 = vector.load %arg1[%c0_6, %c4, %c0_7] : memref<1x24x256xf32, #tpu.memory_space<vmem>>, vector<1x4x256xf32>
    %6 = vector.shape_cast %5 : vector<1x4x256xf32> to vector<4x256xf32>
    %7 = arith.negf %2 : vector<2x256xf32>
    %8 = math.exp %7 : vector<2x256xf32>
    %cst = arith.constant 1.000000e+00 : f32
    %9 = vector.broadcast %cst : f32 to vector<2x256xf32>
    %10 = arith.addf %9, %8 : vector<2x256xf32>
    %11 = arith.divf %9, %10 : vector<2x256xf32>
    %cst_8 = arith.constant 4.000000e+00 : f32
    %12 = vector.broadcast %cst_8 : f32 to vector<2x256xf32>
    %13 = arith.mulf %11, %12 : vector<2x256xf32>
    %14 = arith.addf %13, %0 : vector<2x256xf32>
    %15 = math.exp %4 : vector<2x256xf32>
    %c0_9 = arith.constant 0 : index
    %c0_10 = arith.constant 0 : index
    %16 = vector.load %arg3[%c0_9, %c0_10] : memref<6x1xf32, #tpu.memory_space<vmem>>, vector<2x1xf32>
    %17 = vector.broadcast %16 : vector<2x1xf32> to vector<2x256xf32>
    %18 = arith.mulf %15, %17 : vector<2x256xf32>
    %19 = arith.negf %6 : vector<4x256xf32>
    %20 = math.exp %19 : vector<4x256xf32>
    %cst_11 = arith.constant 1.000000e+00 : f32
    %21 = vector.broadcast %cst_11 : f32 to vector<4x256xf32>
    %22 = arith.addf %21, %20 : vector<4x256xf32>
    %23 = arith.divf %21, %22 : vector<4x256xf32>
    %c0_12 = arith.constant 0 : index
    %c0_13 = arith.constant 0 : index
    %c0_14 = arith.constant 0 : index
    %24 = vector.load %arg4[%c0_12, %c0_13, %c0_14] : memref<1x24x256xf32, #tpu.memory_space<vmem>>, vector<1x2x256xf32>
    %25 = vector.shape_cast %24 : vector<1x2x256xf32> to vector<2x256xf32>
    %26 = vector.shape_cast %14 : vector<2x256xf32> to vector<1x2x256xf32>
    tpu.vector_store %arg4[%c0_12, %c0_13, %c0_14], %26 {strides = array<i32>} : memref<1x24x256xf32, #tpu.memory_space<vmem>>, vector<1x2x256xf32>,
    %c0_15 = arith.constant 0 : index
    %c2_16 = arith.constant 2 : index
    %c0_17 = arith.constant 0 : index
    %27 = vector.load %arg4[%c0_15, %c2_16, %c0_17] : memref<1x24x256xf32, #tpu.memory_space<vmem>>, vector<1x2x256xf32>
    %28 = vector.shape_cast %27 : vector<1x2x256xf32> to vector<2x256xf32>
    %29 = vector.shape_cast %18 : vector<2x256xf32> to vector<1x2x256xf32>
    tpu.vector_store %arg4[%c0_15, %c2_16, %c0_17], %29 {strides = array<i32>} : memref<1x24x256xf32, #tpu.memory_space<vmem>>, vector<1x2x256xf32>,
    %c0_18 = arith.constant 0 : index
    %c4_19 = arith.constant 4 : index
    %c0_20 = arith.constant 0 : index
    %30 = vector.load %arg4[%c0_18, %c4_19, %c0_20] : memref<1x24x256xf32, #tpu.memory_space<vmem>>, vector<1x4x256xf32>
    %31 = vector.shape_cast %30 : vector<1x4x256xf32> to vector<4x256xf32>
    %32 = vector.shape_cast %23 : vector<4x256xf32> to vector<1x4x256xf32>
    tpu.vector_store %arg4[%c0_18, %c4_19, %c0_20], %32 {strides = array<i32>} : memref<1x24x256xf32, #tpu.memory_space<vmem>>, vector<1x4x256xf32>,
    %c0_21 = arith.constant 0 : index
    %c8 = arith.constant 8 : index
    %c0_22 = arith.constant 0 : index
    %33 = vector.load %arg1[%c0_21, %c8, %c0_22] : memref<1x24x256xf32, #tpu.memory_space<vmem>>, vector<1x2x256xf32>
    %34 = vector.shape_cast %33 : vector<1x2x256xf32> to vector<2x256xf32>
    %c0_23 = arith.constant 0 : index
    %c10 = arith.constant 10 : index
    %c0_24 = arith.constant 0 : index
    %35 = vector.load %arg1[%c0_23, %c10, %c0_24] : memref<1x24x256xf32, #tpu.memory_space<vmem>>, vector<1x2x256xf32>
    %36 = vector.shape_cast %35 : vector<1x2x256xf32> to vector<2x256xf32>
    %c0_25 = arith.constant 0 : index
    %c12 = arith.constant 12 : index
    %c0_26 = arith.constant 0 : index
    %37 = vector.load %arg1[%c0_25, %c12, %c0_26] : memref<1x24x256xf32, #tpu.memory_space<vmem>>, vector<1x4x256xf32>
    %38 = vector.shape_cast %37 : vector<1x4x256xf32> to vector<4x256xf32>
    %39 = arith.negf %34 : vector<2x256xf32>
    %40 = math.exp %39 : vector<2x256xf32>
    %cst_27 = arith.constant 1.000000e+00 : f32
    %41 = vector.broadcast %cst_27 : f32 to vector<2x256xf32>
    %42 = arith.addf %41, %40 : vector<2x256xf32>
    %43 = arith.divf %41, %42 : vector<2x256xf32>
    %cst_28 = arith.constant 4.000000e+00 : f32
    %44 = vector.broadcast %cst_28 : f32 to vector<2x256xf32>
    %45 = arith.mulf %43, %44 : vector<2x256xf32>
    %46 = arith.addf %45, %0 : vector<2x256xf32>
    %47 = math.exp %36 : vector<2x256xf32>
    %c2_29 = arith.constant 2 : index
    %c0_30 = arith.constant 0 : index
    %48 = vector.load %arg3[%c2_29, %c0_30] : memref<6x1xf32, #tpu.memory_space<vmem>>, vector<2x1xf32>
    %49 = vector.broadcast %48 : vector<2x1xf32> to vector<2x256xf32>
    %50 = arith.mulf %47, %49 : vector<2x256xf32>
    %51 = arith.negf %38 : vector<4x256xf32>
    %52 = math.exp %51 : vector<4x256xf32>
    %cst_31 = arith.constant 1.000000e+00 : f32
    %53 = vector.broadcast %cst_31 : f32 to vector<4x256xf32>
    %54 = arith.addf %53, %52 : vector<4x256xf32>
    %55 = arith.divf %53, %54 : vector<4x256xf32>
    %c0_32 = arith.constant 0 : index
    %c8_33 = arith.constant 8 : index
    %c0_34 = arith.constant 0 : index
    %56 = vector.load %arg4[%c0_32, %c8_33, %c0_34] : memref<1x24x256xf32, #tpu.memory_space<vmem>>, vector<1x2x256xf32>
    %57 = vector.shape_cast %56 : vector<1x2x256xf32> to vector<2x256xf32>
    %58 = vector.shape_cast %46 : vector<2x256xf32> to vector<1x2x256xf32>
    tpu.vector_store %arg4[%c0_32, %c8_33, %c0_34], %58 {strides = array<i32>} : memref<1x24x256xf32, #tpu.memory_space<vmem>>, vector<1x2x256xf32>,
    %c0_35 = arith.constant 0 : index
    %c10_36 = arith.constant 10 : index
    %c0_37 = arith.constant 0 : index
    %59 = vector.load %arg4[%c0_35, %c10_36, %c0_37] : memref<1x24x256xf32, #tpu.memory_space<vmem>>, vector<1x2x256xf32>
    %60 = vector.shape_cast %59 : vector<1x2x256xf32> to vector<2x256xf32>
    %61 = vector.shape_cast %50 : vector<2x256xf32> to vector<1x2x256xf32>
    tpu.vector_store %arg4[%c0_35, %c10_36, %c0_37], %61 {strides = array<i32>} : memref<1x24x256xf32, #tpu.memory_space<vmem>>, vector<1x2x256xf32>,
    %c0_38 = arith.constant 0 : index
    %c12_39 = arith.constant 12 : index
    %c0_40 = arith.constant 0 : index
    %62 = vector.load %arg4[%c0_38, %c12_39, %c0_40] : memref<1x24x256xf32, #tpu.memory_space<vmem>>, vector<1x4x256xf32>
    %63 = vector.shape_cast %62 : vector<1x4x256xf32> to vector<4x256xf32>
    %64 = vector.shape_cast %55 : vector<4x256xf32> to vector<1x4x256xf32>
    tpu.vector_store %arg4[%c0_38, %c12_39, %c0_40], %64 {strides = array<i32>} : memref<1x24x256xf32, #tpu.memory_space<vmem>>, vector<1x4x256xf32>,
    %c0_41 = arith.constant 0 : index
    %c16 = arith.constant 16 : index
    %c0_42 = arith.constant 0 : index
    %65 = vector.load %arg1[%c0_41, %c16, %c0_42] : memref<1x24x256xf32, #tpu.memory_space<vmem>>, vector<1x2x256xf32>
    %66 = vector.shape_cast %65 : vector<1x2x256xf32> to vector<2x256xf32>
    %c0_43 = arith.constant 0 : index
    %c18 = arith.constant 18 : index
    %c0_44 = arith.constant 0 : index
    %67 = vector.load %arg1[%c0_43, %c18, %c0_44] : memref<1x24x256xf32, #tpu.memory_space<vmem>>, vector<1x2x256xf32>
    %68 = vector.shape_cast %67 : vector<1x2x256xf32> to vector<2x256xf32>
    %c0_45 = arith.constant 0 : index
    %c20 = arith.constant 20 : index
    %c0_46 = arith.constant 0 : index
    %69 = vector.load %arg1[%c0_45, %c20, %c0_46] : memref<1x24x256xf32, #tpu.memory_space<vmem>>, vector<1x4x256xf32>
    %70 = vector.shape_cast %69 : vector<1x4x256xf32> to vector<4x256xf32>
    %71 = arith.negf %66 : vector<2x256xf32>
    %72 = math.exp %71 : vector<2x256xf32>
    %cst_47 = arith.constant 1.000000e+00 : f32
    %73 = vector.broadcast %cst_47 : f32 to vector<2x256xf32>
    %74 = arith.addf %73, %72 : vector<2x256xf32>
    %75 = arith.divf %73, %74 : vector<2x256xf32>
    %cst_48 = arith.constant 4.000000e+00 : f32
    %76 = vector.broadcast %cst_48 : f32 to vector<2x256xf32>
    %77 = arith.mulf %75, %76 : vector<2x256xf32>
    %78 = arith.addf %77, %0 : vector<2x256xf32>
    %79 = math.exp %68 : vector<2x256xf32>
    %c4_49 = arith.constant 4 : index
    %c0_50 = arith.constant 0 : index
    %80 = vector.load %arg3[%c4_49, %c0_50] : memref<6x1xf32, #tpu.memory_space<vmem>>, vector<2x1xf32>
    %81 = vector.broadcast %80 : vector<2x1xf32> to vector<2x256xf32>
    %82 = arith.mulf %79, %81 : vector<2x256xf32>
    %83 = arith.negf %70 : vector<4x256xf32>
    %84 = math.exp %83 : vector<4x256xf32>
    %cst_51 = arith.constant 1.000000e+00 : f32
    %85 = vector.broadcast %cst_51 : f32 to vector<4x256xf32>
    %86 = arith.addf %85, %84 : vector<4x256xf32>
    %87 = arith.divf %85, %86 : vector<4x256xf32>
    %c0_52 = arith.constant 0 : index
    %c16_53 = arith.constant 16 : index
    %c0_54 = arith.constant 0 : index
    %88 = vector.load %arg4[%c0_52, %c16_53, %c0_54] : memref<1x24x256xf32, #tpu.memory_space<vmem>>, vector<1x2x256xf32>
    %89 = vector.shape_cast %88 : vector<1x2x256xf32> to vector<2x256xf32>
    %90 = vector.shape_cast %78 : vector<2x256xf32> to vector<1x2x256xf32>
    tpu.vector_store %arg4[%c0_52, %c16_53, %c0_54], %90 {strides = array<i32>} : memref<1x24x256xf32, #tpu.memory_space<vmem>>, vector<1x2x256xf32>,
    %c0_55 = arith.constant 0 : index
    %c18_56 = arith.constant 18 : index
    %c0_57 = arith.constant 0 : index
    %91 = vector.load %arg4[%c0_55, %c18_56, %c0_57] : memref<1x24x256xf32, #tpu.memory_space<vmem>>, vector<1x2x256xf32>
    %92 = vector.shape_cast %91 : vector<1x2x256xf32> to vector<2x256xf32>
    %93 = vector.shape_cast %82 : vector<2x256xf32> to vector<1x2x256xf32>
    tpu.vector_store %arg4[%c0_55, %c18_56, %c0_57], %93 {strides = array<i32>} : memref<1x24x256xf32, #tpu.memory_space<vmem>>, vector<1x2x256xf32>,
    %c0_58 = arith.constant 0 : index
    %c20_59 = arith.constant 20 : index
    %c0_60 = arith.constant 0 : index
    %94 = vector.load %arg4[%c0_58, %c20_59, %c0_60] : memref<1x24x256xf32, #tpu.memory_space<vmem>>, vector<1x4x256xf32>
    %95 = vector.shape_cast %94 : vector<1x4x256xf32> to vector<4x256xf32>
    %96 = vector.shape_cast %87 : vector<4x256xf32> to vector<1x4x256xf32>
    tpu.vector_store %arg4[%c0_58, %c20_59, %c0_60], %96 {strides = array<i32>} : memref<1x24x256xf32, #tpu.memory_space<vmem>>, vector<1x4x256xf32>,
    return
  }
  func.func @transform_0(%arg0: i32) -> (i32, i32, i32) {
    %c0_i32 = arith.constant 0 : i32
    %c0_i32_0 = arith.constant 0 : i32
    %c0_i32_1 = arith.constant 0 : i32
    return %arg0, %c0_i32, %c0_i32_0 : i32, i32, i32
  }
  func.func @transform_1(%arg0: i32) -> (i32, i32) {
    %c0_i32 = arith.constant 0 : i32
    %c0_i32_0 = arith.constant 0 : i32
    %c0_i32_1 = arith.constant 0 : i32
    return %c0_i32, %c0_i32_0 : i32, i32
  }
  func.func @transform_2(%arg0: i32) -> (i32, i32) {
    %c0_i32 = arith.constant 0 : i32
    %c0_i32_0 = arith.constant 0 : i32
    %c0_i32_1 = arith.constant 0 : i32
    return %c0_i32, %c0_i32_0 : i32, i32
  }
  func.func @transform_3(%arg0: i32) -> (i32, i32, i32) {
    %c0_i32 = arith.constant 0 : i32
    %c0_i32_0 = arith.constant 0 : i32
    %c0_i32_1 = arith.constant 0 : i32
    return %arg0, %c0_i32, %c0_i32_0 : i32, i32, i32
  }
}

</mosaic_0001>

<llo_original>
// kernel: tpu_custom_call.1
$region0: #{tpu_custom_call.1}
  #allocation0 [shape = 'u32[]', space=smem, size = 0x4, offset = 0x4, fixed_abs, tag = 'smem constant byte address 0x4 - core index']
  #allocation1 [shape = 'u32[144,128]{1,0:T(1,128)}', space=vmem, size = 0x12000, scoped, tag = 'internal scratch']
  #allocation2 [shape = 'f32[8,256]{1,0:T(8,128)}', space=vmem, size = 0x2000, scoped, tag = 'scratch operand']
  %s0 = inlined_call_operand.hbm [shape: f32[2,24,256], index: 0, kind: input, shape index: {}]
  %s1 = inlined_call_operand.vmem [shape: f32[2,256], index: 1, kind: input, shape index: {}]
  %s2 = inlined_call_operand.vmem [shape: f32[6,1], index: 2, kind: input, shape index: {}]
  %s3 = inlined_call_operand.vmem [shape: f32[2,768,8], index: 3, kind: output, shape index: {}]
  %s4 = sld [smem:[#allocation0]]
  $region49: #{tpu_custom_call.1} parent=0
    _
  %s6 = ssub.s32 1, %s4
  %s7 = scalar_select 0, %s6, %s4
  $region1: #{tpu_custom_call.1} parent=0
    #allocation3 [shape = 'u8[49152]{0}', space=vmem, size = 0xc000, scoped, tag = 'input window, operand 0']
    #allocation4 [shape = 's32[2]{0}', space=sflag, size = 0x8, scoped, tag = 'scoped memory for tpu_custom_call.1']
    %8 = vsyncpa [#allocation4], 0
    %s9 = scalar_lea.sflag [#allocation4], 1
    %10 = vsyncpa %s9, 0
    loop: start=0, step=1, limit=4
    $region2: #{tpu_custom_call.1} parent=1 // loop_pre_header
      _
    $region3: #{tpu_custom_call.1} parent=1 // loop_header
      %s12 = sphi 0, %s16
      %p13 = scmp.ge.s32.totalorder %s12, 4
      %s22 = sphi 0, %s24
      %s25 = sphi 0, %s22
      %s26 = sphi 0, %s25
      %s42 = sphi 0, %s26
      %s46 = sphi 0, %s46
      %s48 = sphi 0, %s46
      %s49 = sphi 0, %s48
      %s63 = sphi 0, %s49
      %s67 = sphi 0, %s67
      %s69 = sphi 0, %s67
      %s70 = sphi 0, %s69
      %s84 = sphi 0, %s70
      %s90 = sphi 0, %s92
      %s93 = sphi 0, %s90
      %s94 = sphi 0, %s93
      %s110 = sphi 0, %s94
    $region4: #{tpu_custom_call.1} parent=1 // loop_header_branch
      %15 = sbr.rel (%p13) target = $region8
    $region5: #{tpu_custom_call.1} parent=1 // loop_body
      %s17 = ssub.s32 %s12, 1
      %s18 = ssub.s32 %s12, 2
      %s19 = sadd.s32 %s12, 1
      %s20 = ssub.s32 %s12, %s19
      %p21 = scmp.eq.s32.totalorder %s20, 0
      %s23 = sadd.s32 %s22, 1
      %s24 = scalar_select %p21, %s22, %s23
      %p27 = pneg %p21
      %p28 = scmp.eq.s32.totalorder %s12, 1
      %p29 = por %p27, %p28
      %p30 = scmp.ne.s32.totalorder %s22, %s25
      %p31 = scmp.eq.s32.totalorder %s12, 0
      %p32 = por %p30, %p31
      %p33 = scmp.ne.s32.totalorder %s22, %s25
      %p34 = scmp.eq.s32.totalorder %s17, 1
      %p35 = por %p33, %p34
      %p36 = scmp.ne.s32.totalorder %s25, %s26
      %p37 = scmp.eq.s32.totalorder %s17, 0
      %p38 = por %p36, %p37
      %p39 = scmp.ne.s32.totalorder %s25, %s26
      %p40 = scmp.eq.s32.totalorder %s18, 1
      %p41 = por %p39, %p40
      %p43 = scmp.ne.s32.totalorder %s26, %s42
      %p44 = scmp.eq.s32.totalorder %s18, 0
      %p45 = por %p43, %p44
      %s47 = sadd.s32 %s46, 1
      %p50 = scmp.eq.s32.totalorder %s12, 1
      %p51 = scmp.ne.s32.totalorder %s46, %s48
      %p52 = scmp.eq.s32.totalorder %s12, 0
      %p53 = por %p51, %p52
      %p54 = scmp.ne.s32.totalorder %s46, %s48
      %p55 = scmp.eq.s32.totalorder %s17, 1
      %p56 = por %p54, %p55
      %p57 = scmp.ne.s32.totalorder %s48, %s49
      %p58 = scmp.eq.s32.totalorder %s17, 0
      %p59 = por %p57, %p58
      %p60 = scmp.ne.s32.totalorder %s48, %s49
      %p61 = scmp.eq.s32.totalorder %s18, 1
      %p62 = por %p60, %p61
      %p64 = scmp.ne.s32.totalorder %s49, %s63
      %p65 = scmp.eq.s32.totalorder %s18, 0
      %p66 = por %p64, %p65
      %s68 = sadd.s32 %s67, 1
      %p71 = scmp.eq.s32.totalorder %s12, 1
      %p72 = scmp.ne.s32.totalorder %s67, %s69
      %p73 = scmp.eq.s32.totalorder %s12, 0
      %p74 = por %p72, %p73
      %p75 = scmp.ne.s32.totalorder %s67, %s69
      %p76 = scmp.eq.s32.totalorder %s17, 1
      %p77 = por %p75, %p76
      %p78 = scmp.ne.s32.totalorder %s69, %s70
      %p79 = scmp.eq.s32.totalorder %s17, 0
      %p80 = por %p78, %p79
      %p81 = scmp.ne.s32.totalorder %s69, %s70
      %p82 = scmp.eq.s32.totalorder %s18, 1
      %p83 = por %p81, %p82
      %p85 = scmp.ne.s32.totalorder %s70, %s84
      %p86 = scmp.eq.s32.totalorder %s18, 0
      %p87 = por %p85, %p86
      %s88 = ssub.s32 %s12, %s19
      %p89 = scmp.eq.s32.totalorder %s88, 0
      %s91 = sadd.s32 %s90, 1
      %s92 = scalar_select %p89, %s90, %s91
      %p95 = pneg %p89
      %p96 = scmp.eq.s32.totalorder %s12, 1
      %p97 = por %p95, %p96
      %p98 = scmp.ne.s32.totalorder %s90, %s93
      %p99 = scmp.eq.s32.totalorder %s12, 0
      %p100 = por %p98, %p99
      %p101 = scmp.ne.s32.totalorder %s90, %s93
      %p102 = scmp.eq.s32.totalorder %s17, 1
      %p103 = por %p101, %p102
      %p104 = scmp.ne.s32.totalorder %s93, %s94
      %p105 = scmp.eq.s32.totalorder %s17, 0
      %p106 = por %p104, %p105
      %p107 = scmp.ne.s32.totalorder %s93, %s94
      %p108 = scmp.eq.s32.totalorder %s18, 1
      %p109 = por %p107, %p108
      %p111 = scmp.ne.s32.totalorder %s94, %s110
      %p112 = scmp.eq.s32.totalorder %s18, 0
      %p113 = por %p111, %p112
      %p114 = scmp.le.s32.totalorder 1, %s12
      %p115 = scmp.lt.s32.totalorder %s12, 3
      %p116 = pnand %p114, %p115
      %p117 = pneg %p116
      // Predicated region
      $region9: #{tpu_custom_call.1} parent=5 // pred_check
        _
      $region10: #{tpu_custom_call.1} parent=5 // pred_check_branch
        %119 = sbr.rel (%p116) target = $region12
      $region11: #{tpu_custom_call.1} parent=5 // pred_region
        %s120 = ssub.s32 %s12, 1
        // Predicated region
        $region13: #{tpu_custom_call.1} parent=11 // pred_check
          %p121 = pneg %p59
        $region14: #{tpu_custom_call.1} parent=11 // pred_check_branch
          %123 = sbr.rel (%p121) target = $region16
        $region15: #{tpu_custom_call.1} parent=11 // pred_region
          _
        $region16: #{tpu_custom_call.1} parent=11 // pred_fallthru
          _
        // Predicated region
        $region17: #{tpu_custom_call.1} parent=11 // pred_check
          %p124 = pneg %p80
        $region18: #{tpu_custom_call.1} parent=11 // pred_check_branch
          %126 = sbr.rel (%p124) target = $region20
        $region19: #{tpu_custom_call.1} parent=11 // pred_region
          _
        $region20: #{tpu_custom_call.1} parent=11 // pred_fallthru
          _
      $region12: #{tpu_custom_call.1} parent=5 // pred_fallthru
        _
      %p127 = scmp.lt.s32.totalorder %s12, 2
      // Predicated region
      $region21: #{tpu_custom_call.1} parent=5 // pred_check
        %p128 = pneg %p127
      $region22: #{tpu_custom_call.1} parent=5 // pred_check_branch
        %130 = sbr.rel (%p128) target = $region24
      $region23: #{tpu_custom_call.1} parent=5 // pred_region
        // Predicated region
        $region25: #{tpu_custom_call.1} parent=23 // pred_check
          %p131 = pneg %p32
        $region26: #{tpu_custom_call.1} parent=23 // pred_check_branch
          %133 = sbr.rel (%p131) target = $region28
        $region27: #{tpu_custom_call.1} parent=23 // pred_region
          %s134 = sand.u32 %s22, 1
          %s135 = scalar_lea.sflag [#allocation4], %s134
          %s136 = sand.u32 %s22, 1
          %s137 = smul.addr %s136, 48
          %s138 = scalar_lea.vmem [#allocation3], %s137
          %s140 = ssub.s32 768, 768
          %141 = vsyncadd %s135, %s140
          %s142 = smul.addr %s12, 6
          %s143 = smul.addr %s142, 128
          %s144 = scalar_lea.hbm %s0, %s143
          %s145 = sshll.u32 %s138, 4
          %s146 = int_to_ptr.vmem [resolvable:$true] %s145
          %151 = dma.hbm_to_vmem [thread:$0]  %s144, 768, %s146, %s135, 256, 256, 16
        $region28: #{tpu_custom_call.1} parent=23 // pred_fallthru
          _
      $region24: #{tpu_custom_call.1} parent=5 // pred_fallthru
        _
      %p152 = scmp.le.s32.totalorder 1, %s12
      %p153 = scmp.lt.s32.totalorder %s12, 3
      %p154 = pnand %p152, %p153
      %p155 = pneg %p154
      // Predicated region
      $region29: #{tpu_custom_call.1} parent=5 // pred_check
        _
      $region30: #{tpu_custom_call.1} parent=5 // pred_check_branch
        %157 = sbr.rel (%p154) target = $region32
      $region31: #{tpu_custom_call.1} parent=5 // pred_region
        %s158 = ssub.s32 %s12, 1
        %s159 = sand.u32 %s25, 1
        %s160 = scalar_lea.sflag [#allocation4], %s159
        %s161 = sand.u32 %s25, 1
        %s162 = smul.addr %s161, 48
        %s163 = scalar_lea.vmem [#allocation3], %s162
        // Predicated region
        $region33: #{tpu_custom_call.1} parent=31 // pred_check
          %p164 = pneg %p38
        $region34: #{tpu_custom_call.1} parent=31 // pred_check_branch
          %166 = sbr.rel (%p164) target = $region36
        $region35: #{tpu_custom_call.1} parent=31 // pred_region
          %167 = dma.done %s160, 768
        $region36: #{tpu_custom_call.1} parent=31 // pred_fallthru
          _
        %s168 = sand.u32 %s25, 1
        %s169 = scalar_lea.sflag [#allocation4], %s168
        %s170 = sand.u32 %s25, 1
        %s171 = smul.addr %s170, 48
        %s172 = scalar_lea.vmem [#allocation3], %s171
        %p173 = pneg %p38
        %p174 = pneg %p35
        %p175 = pneg %p59
        %p176 = pneg %p56
        %p177 = pneg %p80
        %p178 = pneg %p77
        %p179 = pneg %p106
        %p180 = pneg %p103
        %p181 = scmp.lt.s32.totalorder %s17, 1
        %s182 = scalar_select %p181, %s17, 1
        %s183 = smul.addr %s182, 96
        %s184 = smul.addr %s183, 8
        %s185 = scalar_lea.vmem %s3, %s184
        %p186 = scmp.lt.s32.totalorder %s17, 1
        %s187 = scalar_select %p186, %s17, 1
        %s188 = smul.addr %s187, 96
        %s189 = smul.addr %s188, 8
        %s190 = scalar_lea.vmem %s3, %s189
        %v191 = vld [vmem:[%s1] sm:$0xf]
        %v192 = vld [vmem:[%s163] sm:$0x3]
        %v193 = vld [vmem:[%s163 + $0x8] sm:$0x3]
        %v194 = vld [vmem:[%s163] sm:$0xc]
        %v195 = vld [vmem:[%s163 + $0x8] sm:$0xc]
        %v196 = vld [vmem:[%s163] sm:$0xf0]
        %v197 = vld [vmem:[%s163 + $0x8] sm:$0xf0]
        %v198 = vxor.u32 %v192, 2147483648
        %v199 = vxor.u32 %v193, 2147483648
        %v200 = vmul.f32 %v198, 1.442695
        %v201 = vpow.pop %v200
        %v202 = vmul.f32 %v199, 1.442695
        %v203 = vpow.pop %v202
        %v204 = vadd.f32 %v201, 1.0
        %v205 = vadd.f32 %v203, 1.0
        %v206 = vrcp.pop %v204
        %v207 = vmul.f32 1.0, %v206
        %v208 = vrcp.pop %v205
        %v209 = vmul.f32 1.0, %v208
        %v210 = vmul.f32 %v207, 4.0
        %v211 = vmul.f32 %v209, 4.0
        %v214 = vunpack.c.l.s4 1983009808
        %v215 = vunpack.c.0.s8 %v214
        %v216 = vlaneseq
        %v217 = vshrl.u32 %v216, 7
        %v218 = vsub.s32 %v215, %v217
        %v219 = vrot.slane %v191, %v218
        %v220 = vcombine.high %v219, %v219
        %v223 = vadd.f32 %v210, %v219
        %v224 = vadd.f32 %v211, %v220
        %v225 = vmul.f32 %v194, 1.442695
        %v226 = vpow.pop %v225
        %v227 = vmul.f32 %v195, 1.442695
        %v228 = vpow.pop %v227
        %v229 = vld [vmem:[%s2] sm:$0x3]
        %231 = vset.pattern.permute.xlu0 0
        %232 = vperm.xlu0 %231, %v229
        %v233 = vpop.permute.xlu0 %232
        %v234 = vrot.slane %v233, 6
        %v236 = vmul.f32 %v226, %v234
        %v237 = vmul.f32 %v228, %v234
        %v238 = vxor.u32 %v196, 2147483648
        %v239 = vxor.u32 %v197, 2147483648
        %v240 = vmul.f32 %v238, 1.442695
        %v241 = vpow.pop %v240
        %v242 = vmul.f32 %v239, 1.442695
        %v243 = vpow.pop %v242
        %v244 = vadd.f32 %v241, 1.0
        %v245 = vadd.f32 %v243, 1.0
        %v246 = vrcp.pop %v244
        %v247 = vmul.f32 1.0, %v246
        %v248 = vrcp.pop %v245
        %v249 = vmul.f32 1.0, %v248
        %250 = vst [vmem:[#allocation2] sm:$0x3] %v223
        %251 = vst [vmem:[#allocation2 + $0x8] sm:$0x3] %v224
        %252 = vst [vmem:[#allocation2] sm:$0xc] %v236
        %253 = vst [vmem:[#allocation2 + $0x8] sm:$0xc] %v237
        %254 = vst [vmem:[#allocation2] sm:$0xf0] %v247
        %255 = vst [vmem:[#allocation2 + $0x8] sm:$0xf0] %v249
        %v256 = vld [vmem:[#allocation2] sm:$0xff]
        %v257 = vld [vmem:[#allocation2 + $0x8] sm:$0xff]
        %258 = vxpose.xlu0.b32.start [1/16] %v256, 128
        %259 = vxpose.xlu0.b32.cont [2/16] 0.0, 128
        %260 = vxpose.xlu0.b32.cont [3/16] 0.0, 128
        %261 = vxpose.xlu0.b32.cont [4/16] 0.0, 128
        %262 = vxpose.xlu0.b32.cont [5/16] 0.0, 128
        %263 = vxpose.xlu0.b32.cont [6/16] 0.0, 128
        %264 = vxpose.xlu0.b32.cont [7/16] 0.0, 128
        %265 = vxpose.xlu0.b32.cont [8/16] 0.0, 128
        %266 = vxpose.xlu0.b32.cont [9/16] 0.0, 128
        %267 = vxpose.xlu0.b32.cont [10/16] 0.0, 128
        %268 = vxpose.xlu0.b32.cont [11/16] 0.0, 128
        %269 = vxpose.xlu0.b32.cont [12/16] 0.0, 128
        %270 = vxpose.xlu0.b32.cont [13/16] 0.0, 128
        %271 = vxpose.xlu0.b32.cont [14/16] 0.0, 128
        %272 = vxpose.xlu0.b32.cont [15/16] 0.0, 128
        %273 = vxpose.xlu0.b32.end [16/16] 0.0, 128
        %v274 = vpop.trf.xlu0
        %v275 = vpop.trf.xlu0
        %v276 = vpop.trf.xlu0
        %v277 = vpop.trf.xlu0
        %v278 = vpop.trf.xlu0
        %v279 = vpop.trf.xlu0
        %v280 = vpop.trf.xlu0
        %v281 = vpop.trf.xlu0
        %v282 = vpop.trf.xlu0
        %v283 = vpop.trf.xlu0
        %v284 = vpop.trf.xlu0
        %v285 = vpop.trf.xlu0
        %v286 = vpop.trf.xlu0
        %v287 = vpop.trf.xlu0
        %v288 = vpop.trf.xlu0
        %v289 = vpop.trf.xlu0
        %290 = vxpose.xlu0.b32.start [1/16] %v257, 128
        %291 = vxpose.xlu0.b32.cont [2/16] 0.0, 128
        %292 = vxpose.xlu0.b32.cont [3/16] 0.0, 128
        %293 = vxpose.xlu0.b32.cont [4/16] 0.0, 128
        %294 = vxpose.xlu0.b32.cont [5/16] 0.0, 128
        %295 = vxpose.xlu0.b32.cont [6/16] 0.0, 128
        %296 = vxpose.xlu0.b32.cont [7/16] 0.0, 128
        %297 = vxpose.xlu0.b32.cont [8/16] 0.0, 128
        %298 = vxpose.xlu0.b32.cont [9/16] 0.0, 128
        %299 = vxpose.xlu0.b32.cont [10/16] 0.0, 128
        %300 = vxpose.xlu0.b32.cont [11/16] 0.0, 128
        %301 = vxpose.xlu0.b32.cont [12/16] 0.0, 128
        %302 = vxpose.xlu0.b32.cont [13/16] 0.0, 128
        %303 = vxpose.xlu0.b32.cont [14/16] 0.0, 128
        %304 = vxpose.xlu0.b32.cont [15/16] 0.0, 128
        %305 = vxpose.xlu0.b32.end [16/16] 0.0, 128
        %v306 = vpop.trf.xlu0
        %v307 = vpop.trf.xlu0
        %v308 = vpop.trf.xlu0
        %v309 = vpop.trf.xlu0
        %v310 = vpop.trf.xlu0
        %v311 = vpop.trf.xlu0
        %v312 = vpop.trf.xlu0
        %v313 = vpop.trf.xlu0
        %v314 = vpop.trf.xlu0
        %v315 = vpop.trf.xlu0
        %v316 = vpop.trf.xlu0
        %v317 = vpop.trf.xlu0
        %v318 = vpop.trf.xlu0
        %v319 = vpop.trf.xlu0
        %v320 = vpop.trf.xlu0
        %v321 = vpop.trf.xlu0
        %vm322 = vcmask 64512
        %323 = vst.msk [vmem:[%s190] sm:$0xff] %vm322, %v274
        %324 = vst.msk [vmem:[%s190 + $0x8] sm:$0xff] %vm322, %v275
        %325 = vst.msk [vmem:[%s190 + $0x10] sm:$0xff] %vm322, %v276
        %326 = vst.msk [vmem:[%s190 + $0x18] sm:$0xff] %vm322, %v277
        %327 = vst.msk [vmem:[%s190 + $0x20] sm:$0xff] %vm322, %v278
        %328 = vst.msk [vmem:[%s190 + $0x28] sm:$0xff] %vm322, %v279
        %329 = vst.msk [vmem:[%s190 + $0x30] sm:$0xff] %vm322, %v280
        %330 = vst.msk [vmem:[%s190 + $0x38] sm:$0xff] %vm322, %v281
        %331 = vst.msk [vmem:[%s190 + $0x40] sm:$0xff] %vm322, %v282
        %332 = vst.msk [vmem:[%s190 + $0x48] sm:$0xff] %vm322, %v283
        %333 = vst.msk [vmem:[%s190 + $0x50] sm:$0xff] %vm322, %v284
        %334 = vst.msk [vmem:[%s190 + $0x58] sm:$0xff] %vm322, %v285
        %335 = vst.msk [vmem:[%s190 + $0x60] sm:$0xff] %vm322, %v286
        %336 = vst.msk [vmem:[%s190 + $0x68] sm:$0xff] %vm322, %v287
        %337 = vst.msk [vmem:[%s190 + $0x70] sm:$0xff] %vm322, %v288
        %338 = vst.msk [vmem:[%s190 + $0x78] sm:$0xff] %vm322, %v289
        %339 = vst.msk [vmem:[%s190 + $0x80] sm:$0xff] %vm322, %v306
        %340 = vst.msk [vmem:[%s190 + $0x88] sm:$0xff] %vm322, %v307
        %341 = vst.msk [vmem:[%s190 + $0x90] sm:$0xff] %vm322, %v308
        %342 = vst.msk [vmem:[%s190 + $0x98] sm:$0xff] %vm322, %v309
        %343 = vst.msk [vmem:[%s190 + $0xa0] sm:$0xff] %vm322, %v310
        %344 = vst.msk [vmem:[%s190 + $0xa8] sm:$0xff] %vm322, %v311
        %345 = vst.msk [vmem:[%s190 + $0xb0] sm:$0xff] %vm322, %v312
        %346 = vst.msk [vmem:[%s190 + $0xb8] sm:$0xff] %vm322, %v313
        %347 = vst.msk [vmem:[%s190 + $0xc0] sm:$0xff] %vm322, %v314
        %348 = vst.msk [vmem:[%s190 + $0xc8] sm:$0xff] %vm322, %v315
        %349 = vst.msk [vmem:[%s190 + $0xd0] sm:$0xff] %vm322, %v316
        %350 = vst.msk [vmem:[%s190 + $0xd8] sm:$0xff] %vm322, %v317
        %351 = vst.msk [vmem:[%s190 + $0xe0] sm:$0xff] %vm322, %v318
        %352 = vst.msk [vmem:[%s190 + $0xe8] sm:$0xff] %vm322, %v319
        %353 = vst.msk [vmem:[%s190 + $0xf0] sm:$0xff] %vm322, %v320
        %354 = vst.msk [vmem:[%s190 + $0xf8] sm:$0xff] %vm322, %v321
        %v355 = vld [vmem:[%s163 + $0x10] sm:$0x3]
        %v356 = vld [vmem:[%s163 + $0x18] sm:$0x3]
        %v357 = vld [vmem:[%s163 + $0x10] sm:$0xc]
        %v358 = vld [vmem:[%s163 + $0x18] sm:$0xc]
        %v359 = vld [vmem:[%s163 + $0x10] sm:$0xf0]
        %v360 = vld [vmem:[%s163 + $0x18] sm:$0xf0]
        %v361 = vxor.u32 %v355, 2147483648
        %v362 = vxor.u32 %v356, 2147483648
        %v363 = vmul.f32 %v361, 1.442695
        %v364 = vpow.pop %v363
        %v365 = vmul.f32 %v362, 1.442695
        %v366 = vpow.pop %v365
        %v367 = vadd.f32 %v364, 1.0
        %v368 = vadd.f32 %v366, 1.0
        %v369 = vrcp.pop %v367
        %v370 = vmul.f32 1.0, %v369
        %v371 = vrcp.pop %v368
        %v372 = vmul.f32 1.0, %v371
        %v373 = vmul.f32 %v370, 4.0
        %v374 = vmul.f32 %v372, 4.0
        %v375 = vadd.f32 %v373, %v219
        %v376 = vadd.f32 %v374, %v220
        %v377 = vmul.f32 %v357, 1.442695
        %v378 = vpow.pop %v377
        %v379 = vmul.f32 %v358, 1.442695
        %v380 = vpow.pop %v379
        %v381 = vld [vmem:[%s2 + $0x2] sm:$0x3]
        %383 = vset.pattern.permute.xlu0 0
        %384 = vperm.xlu0 %383, %v381
        %v385 = vpop.permute.xlu0 %384
        %v386 = vrot.slane %v385, 6
        %v388 = vmul.f32 %v378, %v386
        %v389 = vmul.f32 %v380, %v386
        %v390 = vxor.u32 %v359, 2147483648
        %v391 = vxor.u32 %v360, 2147483648
        %v392 = vmul.f32 %v390, 1.442695
        %v393 = vpow.pop %v392
        %v394 = vmul.f32 %v391, 1.442695
        %v395 = vpow.pop %v394
        %v396 = vadd.f32 %v393, 1.0
        %v397 = vadd.f32 %v395, 1.0
        %v398 = vrcp.pop %v396
        %v399 = vmul.f32 1.0, %v398
        %v400 = vrcp.pop %v397
        %v401 = vmul.f32 1.0, %v400
        %402 = vst [vmem:[#allocation2] sm:$0x3] %v375
        %403 = vst [vmem:[#allocation2 + $0x8] sm:$0x3] %v376
        %404 = vst [vmem:[#allocation2] sm:$0xc] %v388
        %405 = vst [vmem:[#allocation2 + $0x8] sm:$0xc] %v389
        %406 = vst [vmem:[#allocation2] sm:$0xf0] %v399
        %407 = vst [vmem:[#allocation2 + $0x8] sm:$0xf0] %v401
        %v408 = vld [vmem:[#allocation2] sm:$0xff]
        %v409 = vld [vmem:[#allocation2 + $0x8] sm:$0xff]
        %410 = vxpose.xlu0.b32.start [1/16] %v408, 128
        %411 = vxpose.xlu0.b32.cont [2/16] 0.0, 128
        %412 = vxpose.xlu0.b32.cont [3/16] 0.0, 128
        %413 = vxpose.xlu0.b32.cont [4/16] 0.0, 128
        %414 = vxpose.xlu0.b32.cont [5/16] 0.0, 128
        %415 = vxpose.xlu0.b32.cont [6/16] 0.0, 128
        %416 = vxpose.xlu0.b32.cont [7/16] 0.0, 128
        %417 = vxpose.xlu0.b32.cont [8/16] 0.0, 128
        %418 = vxpose.xlu0.b32.cont [9/16] 0.0, 128
        %419 = vxpose.xlu0.b32.cont [10/16] 0.0, 128
        %420 = vxpose.xlu0.b32.cont [11/16] 0.0, 128
        %421 = vxpose.xlu0.b32.cont [12/16] 0.0, 128
        %422 = vxpose.xlu0.b32.cont [13/16] 0.0, 128
        %423 = vxpose.xlu0.b32.cont [14/16] 0.0, 128
        %424 = vxpose.xlu0.b32.cont [15/16] 0.0, 128
        %425 = vxpose.xlu0.b32.end [16/16] 0.0, 128
        %v426 = vpop.trf.xlu0
        %v427 = vpop.trf.xlu0
        %v428 = vpop.trf.xlu0
        %v429 = vpop.trf.xlu0
        %v430 = vpop.trf.xlu0
        %v431 = vpop.trf.xlu0
        %v432 = vpop.trf.xlu0
        %v433 = vpop.trf.xlu0
        %v434 = vpop.trf.xlu0
        %v435 = vpop.trf.xlu0
        %v436 = vpop.trf.xlu0
        %v437 = vpop.trf.xlu0
        %v438 = vpop.trf.xlu0
        %v439 = vpop.trf.xlu0
        %v440 = vpop.trf.xlu0
        %v441 = vpop.trf.xlu0
        %442 = vxpose.xlu0.b32.start [1/16] %v409, 128
        %443 = vxpose.xlu0.b32.cont [2/16] 0.0, 128
        %444 = vxpose.xlu0.b32.cont [3/16] 0.0, 128
        %445 = vxpose.xlu0.b32.cont [4/16] 0.0, 128
        %446 = vxpose.xlu0.b32.cont [5/16] 0.0, 128
        %447 = vxpose.xlu0.b32.cont [6/16] 0.0, 128
        %448 = vxpose.xlu0.b32.cont [7/16] 0.0, 128
        %449 = vxpose.xlu0.b32.cont [8/16] 0.0, 128
        %450 = vxpose.xlu0.b32.cont [9/16] 0.0, 128
        %451 = vxpose.xlu0.b32.cont [10/16] 0.0, 128
        %452 = vxpose.xlu0.b32.cont [11/16] 0.0, 128
        %453 = vxpose.xlu0.b32.cont [12/16] 0.0, 128
        %454 = vxpose.xlu0.b32.cont [13/16] 0.0, 128
        %455 = vxpose.xlu0.b32.cont [14/16] 0.0, 128
        %456 = vxpose.xlu0.b32.cont [15/16] 0.0, 128
        %457 = vxpose.xlu0.b32.end [16/16] 0.0, 128
        %v458 = vpop.trf.xlu0
        %v459 = vpop.trf.xlu0
        %v460 = vpop.trf.xlu0
        %v461 = vpop.trf.xlu0
        %v462 = vpop.trf.xlu0
        %v463 = vpop.trf.xlu0
        %v464 = vpop.trf.xlu0
        %v465 = vpop.trf.xlu0
        %v466 = vpop.trf.xlu0
        %v467 = vpop.trf.xlu0
        %v468 = vpop.trf.xlu0
        %v469 = vpop.trf.xlu0
        %v470 = vpop.trf.xlu0
        %v471 = vpop.trf.xlu0
        %v472 = vpop.trf.xlu0
        %v473 = vpop.trf.xlu0
        %474 = vst.msk [vmem:[%s190 + $0x100] sm:$0xff] %vm322, %v426
        %475 = vst.msk [vmem:[%s190 + $0x108] sm:$0xff] %vm322, %v427
        %476 = vst.msk [vmem:[%s190 + $0x110] sm:$0xff] %vm322, %v428
        %477 = vst.msk [vmem:[%s190 + $0x118] sm:$0xff] %vm322, %v429
        %478 = vst.msk [vmem:[%s190 + $0x120] sm:$0xff] %vm322, %v430
        %479 = vst.msk [vmem:[%s190 + $0x128] sm:$0xff] %vm322, %v431
        %480 = vst.msk [vmem:[%s190 + $0x130] sm:$0xff] %vm322, %v432
        %481 = vst.msk [vmem:[%s190 + $0x138] sm:$0xff] %vm322, %v433
        %482 = vst.msk [vmem:[%s190 + $0x140] sm:$0xff] %vm322, %v434
        %483 = vst.msk [vmem:[%s190 + $0x148] sm:$0xff] %vm322, %v435
        %484 = vst.msk [vmem:[%s190 + $0x150] sm:$0xff] %vm322, %v436
        %485 = vst.msk [vmem:[%s190 + $0x158] sm:$0xff] %vm322, %v437
        %486 = vst.msk [vmem:[%s190 + $0x160] sm:$0xff] %vm322, %v438
        %487 = vst.msk [vmem:[%s190 + $0x168] sm:$0xff] %vm322, %v439
        %488 = vst.msk [vmem:[%s190 + $0x170] sm:$0xff] %vm322, %v440
        %489 = vst.msk [vmem:[%s190 + $0x178] sm:$0xff] %vm322, %v441
        %490 = vst.msk [vmem:[%s190 + $0x180] sm:$0xff] %vm322, %v458
        %491 = vst.msk [vmem:[%s190 + $0x188] sm:$0xff] %vm322, %v459
        %492 = vst.msk [vmem:[%s190 + $0x190] sm:$0xff] %vm322, %v460
        %493 = vst.msk [vmem:[%s190 + $0x198] sm:$0xff] %vm322, %v461
        %494 = vst.msk [vmem:[%s190 + $0x1a0] sm:$0xff] %vm322, %v462
        %495 = vst.msk [vmem:[%s190 + $0x1a8] sm:$0xff] %vm322, %v463
        %496 = vst.msk [vmem:[%s190 + $0x1b0] sm:$0xff] %vm322, %v464
        %497 = vst.msk [vmem:[%s190 + $0x1b8] sm:$0xff] %vm322, %v465
        %498 = vst.msk [vmem:[%s190 + $0x1c0] sm:$0xff] %vm322, %v466
        %499 = vst.msk [vmem:[%s190 + $0x1c8] sm:$0xff] %vm322, %v467
        %500 = vst.msk [vmem:[%s190 + $0x1d0] sm:$0xff] %vm322, %v468
        %501 = vst.msk [vmem:[%s190 + $0x1d8] sm:$0xff] %vm322, %v469
        %502 = vst.msk [vmem:[%s190 + $0x1e0] sm:$0xff] %vm322, %v470
        %503 = vst.msk [vmem:[%s190 + $0x1e8] sm:$0xff] %vm322, %v471
        %504 = vst.msk [vmem:[%s190 + $0x1f0] sm:$0xff] %vm322, %v472
        %505 = vst.msk [vmem:[%s190 + $0x1f8] sm:$0xff] %vm322, %v473
        %v506 = vld [vmem:[%s163 + $0x20] sm:$0x3]
        %v507 = vld [vmem:[%s163 + $0x28] sm:$0x3]
        %v508 = vld [vmem:[%s163 + $0x20] sm:$0xc]
        %v509 = vld [vmem:[%s163 + $0x28] sm:$0xc]
        %v510 = vld [vmem:[%s163 + $0x20] sm:$0xf0]
        %v511 = vld [vmem:[%s163 + $0x28] sm:$0xf0]
        %v512 = vxor.u32 %v506, 2147483648
        %v513 = vxor.u32 %v507, 2147483648
        %v514 = vmul.f32 %v512, 1.442695
        %v515 = vpow.pop %v514
        %v516 = vmul.f32 %v513, 1.442695
        %v517 = vpow.pop %v516
        %v518 = vadd.f32 %v515, 1.0
        %v519 = vadd.f32 %v517, 1.0
        %v520 = vrcp.pop %v518
        %v521 = vmul.f32 1.0, %v520
        %v522 = vrcp.pop %v519
        %v523 = vmul.f32 1.0, %v522
        %v524 = vmul.f32 %v521, 4.0
        %v525 = vmul.f32 %v523, 4.0
        %v526 = vadd.f32 %v524, %v219
        %v527 = vadd.f32 %v525, %v220
        %v528 = vmul.f32 %v508, 1.442695
        %v529 = vpow.pop %v528
        %v530 = vmul.f32 %v509, 1.442695
        %v531 = vpow.pop %v530
        %v532 = vld [vmem:[%s2 + $0x4] sm:$0x3]
        %534 = vset.pattern.permute.xlu0 0
        %535 = vperm.xlu0 %534, %v532
        %v536 = vpop.permute.xlu0 %535
        %v537 = vrot.slane %v536, 6
        %v539 = vmul.f32 %v529, %v537
        %v540 = vmul.f32 %v531, %v537
        %v541 = vxor.u32 %v510, 2147483648
        %v542 = vxor.u32 %v511, 2147483648
        %v543 = vmul.f32 %v541, 1.442695
        %v544 = vpow.pop %v543
        %v545 = vmul.f32 %v542, 1.442695
        %v546 = vpow.pop %v545
        %v547 = vadd.f32 %v544, 1.0
        %v548 = vadd.f32 %v546, 1.0
        %v549 = vrcp.pop %v547
        %v550 = vmul.f32 1.0, %v549
        %v551 = vrcp.pop %v548
        %v552 = vmul.f32 1.0, %v551
        %553 = vst [vmem:[#allocation2] sm:$0x3] %v526
        %554 = vst [vmem:[#allocation2 + $0x8] sm:$0x3] %v527
        %555 = vst [vmem:[#allocation2] sm:$0xc] %v539
        %556 = vst [vmem:[#allocation2 + $0x8] sm:$0xc] %v540
        %557 = vst [vmem:[#allocation2] sm:$0xf0] %v550
        %558 = vst [vmem:[#allocation2 + $0x8] sm:$0xf0] %v552
        %v559 = vld [vmem:[#allocation2] sm:$0xff]
        %v560 = vld [vmem:[#allocation2 + $0x8] sm:$0xff]
        %561 = vxpose.xlu0.b32.start [1/16] %v559, 128
        %562 = vxpose.xlu0.b32.cont [2/16] 0.0, 128
        %563 = vxpose.xlu0.b32.cont [3/16] 0.0, 128
        %564 = vxpose.xlu0.b32.cont [4/16] 0.0, 128
        %565 = vxpose.xlu0.b32.cont [5/16] 0.0, 128
        %566 = vxpose.xlu0.b32.cont [6/16] 0.0, 128
        %567 = vxpose.xlu0.b32.cont [7/16] 0.0, 128
        %568 = vxpose.xlu0.b32.cont [8/16] 0.0, 128
        %569 = vxpose.xlu0.b32.cont [9/16] 0.0, 128
        %570 = vxpose.xlu0.b32.cont [10/16] 0.0, 128
        %571 = vxpose.xlu0.b32.cont [11/16] 0.0, 128
        %572 = vxpose.xlu0.b32.cont [12/16] 0.0, 128
        %573 = vxpose.xlu0.b32.cont [13/16] 0.0, 128
        %574 = vxpose.xlu0.b32.cont [14/16] 0.0, 128
        %575 = vxpose.xlu0.b32.cont [15/16] 0.0, 128
        %576 = vxpose.xlu0.b32.end [16/16] 0.0, 128
        %v577 = vpop.trf.xlu0
        %v578 = vpop.trf.xlu0
        %v579 = vpop.trf.xlu0
        %v580 = vpop.trf.xlu0
        %v581 = vpop.trf.xlu0
        %v582 = vpop.trf.xlu0
        %v583 = vpop.trf.xlu0
        %v584 = vpop.trf.xlu0
        %v585 = vpop.trf.xlu0
        %v586 = vpop.trf.xlu0
        %v587 = vpop.trf.xlu0
        %v588 = vpop.trf.xlu0
        %v589 = vpop.trf.xlu0
        %v590 = vpop.trf.xlu0
        %v591 = vpop.trf.xlu0
        %v592 = vpop.trf.xlu0
        %593 = vxpose.xlu0.b32.start [1/16] %v560, 128
        %594 = vxpose.xlu0.b32.cont [2/16] 0.0, 128
        %595 = vxpose.xlu0.b32.cont [3/16] 0.0, 128
        %596 = vxpose.xlu0.b32.cont [4/16] 0.0, 128
        %597 = vxpose.xlu0.b32.cont [5/16] 0.0, 128
        %598 = vxpose.xlu0.b32.cont [6/16] 0.0, 128
        %599 = vxpose.xlu0.b32.cont [7/16] 0.0, 128
        %600 = vxpose.xlu0.b32.cont [8/16] 0.0, 128
        %601 = vxpose.xlu0.b32.cont [9/16] 0.0, 128
        %602 = vxpose.xlu0.b32.cont [10/16] 0.0, 128
        %603 = vxpose.xlu0.b32.cont [11/16] 0.0, 128
        %604 = vxpose.xlu0.b32.cont [12/16] 0.0, 128
        %605 = vxpose.xlu0.b32.cont [13/16] 0.0, 128
        %606 = vxpose.xlu0.b32.cont [14/16] 0.0, 128
        %607 = vxpose.xlu0.b32.cont [15/16] 0.0, 128
        %608 = vxpose.xlu0.b32.end [16/16] 0.0, 128
        %v609 = vpop.trf.xlu0
        %v610 = vpop.trf.xlu0
        %v611 = vpop.trf.xlu0
        %v612 = vpop.trf.xlu0
        %v613 = vpop.trf.xlu0
        %v614 = vpop.trf.xlu0
        %v615 = vpop.trf.xlu0
        %v616 = vpop.trf.xlu0
        %v617 = vpop.trf.xlu0
        %v618 = vpop.trf.xlu0
        %v619 = vpop.trf.xlu0
        %v620 = vpop.trf.xlu0
        %v621 = vpop.trf.xlu0
        %v622 = vpop.trf.xlu0
        %v623 = vpop.trf.xlu0
        %v624 = vpop.trf.xlu0
        %625 = vst.msk [vmem:[%s190 + $0x200] sm:$0xff] %vm322, %v577
        %626 = vst.msk [vmem:[%s190 + $0x208] sm:$0xff] %vm322, %v578
        %627 = vst.msk [vmem:[%s190 + $0x210] sm:$0xff] %vm322, %v579
        %628 = vst.msk [vmem:[%s190 + $0x218] sm:$0xff] %vm322, %v580
        %629 = vst.msk [vmem:[%s190 + $0x220] sm:$0xff] %vm322, %v581
        %630 = vst.msk [vmem:[%s190 + $0x228] sm:$0xff] %vm322, %v582
        %631 = vst.msk [vmem:[%s190 + $0x230] sm:$0xff] %vm322, %v583
        %632 = vst.msk [vmem:[%s190 + $0x238] sm:$0xff] %vm322, %v584
        %633 = vst.msk [vmem:[%s190 + $0x240] sm:$0xff] %vm322, %v585
        %634 = vst.msk [vmem:[%s190 + $0x248] sm:$0xff] %vm322, %v586
        %635 = vst.msk [vmem:[%s190 + $0x250] sm:$0xff] %vm322, %v587
        %636 = vst.msk [vmem:[%s190 + $0x258] sm:$0xff] %vm322, %v588
        %637 = vst.msk [vmem:[%s190 + $0x260] sm:$0xff] %vm322, %v589
        %638 = vst.msk [vmem:[%s190 + $0x268] sm:$0xff] %vm322, %v590
        %639 = vst.msk [vmem:[%s190 + $0x270] sm:$0xff] %vm322, %v591
        %640 = vst.msk [vmem:[%s190 + $0x278] sm:$0xff] %vm322, %v592
        %641 = vst.msk [vmem:[%s190 + $0x280] sm:$0xff] %vm322, %v609
        %642 = vst.msk [vmem:[%s190 + $0x288] sm:$0xff] %vm322, %v610
        %643 = vst.msk [vmem:[%s190 + $0x290] sm:$0xff] %vm322, %v611
        %644 = vst.msk [vmem:[%s190 + $0x298] sm:$0xff] %vm322, %v612
        %645 = vst.msk [vmem:[%s190 + $0x2a0] sm:$0xff] %vm322, %v613
        %646 = vst.msk [vmem:[%s190 + $0x2a8] sm:$0xff] %vm322, %v614
        %647 = vst.msk [vmem:[%s190 + $0x2b0] sm:$0xff] %vm322, %v615
        %648 = vst.msk [vmem:[%s190 + $0x2b8] sm:$0xff] %vm322, %v616
        %649 = vst.msk [vmem:[%s190 + $0x2c0] sm:$0xff] %vm322, %v617
        %650 = vst.msk [vmem:[%s190 + $0x2c8] sm:$0xff] %vm322, %v618
        %651 = vst.msk [vmem:[%s190 + $0x2d0] sm:$0xff] %vm322, %v619
        %652 = vst.msk [vmem:[%s190 + $0x2d8] sm:$0xff] %vm322, %v620
        %653 = vst.msk [vmem:[%s190 + $0x2e0] sm:$0xff] %vm322, %v621
        %654 = vst.msk [vmem:[%s190 + $0x2e8] sm:$0xff] %vm322, %v622
        %655 = vst.msk [vmem:[%s190 + $0x2f0] sm:$0xff] %vm322, %v623
        %656 = vst.msk [vmem:[%s190 + $0x2f8] sm:$0xff] %vm322, %v624
        %p657 = scmp.lt.s32.totalorder %s17, 1
        %s658 = scalar_select %p657, %s17, 1
        %s659 = smul.addr %s658, 96
        %s660 = smul.addr %s659, 8
        %s661 = scalar_lea.vmem %s3, %s660
        // Predicated region
        $region37: #{tpu_custom_call.1} parent=31 // pred_check
          %p662 = pneg %p103
        $region38: #{tpu_custom_call.1} parent=31 // pred_check_branch
          %664 = sbr.rel (%p662) target = $region40
        $region39: #{tpu_custom_call.1} parent=31 // pred_region
          _
        $region40: #{tpu_custom_call.1} parent=31 // pred_fallthru
          _
      $region32: #{tpu_custom_call.1} parent=5 // pred_fallthru
        _
      %p665 = scmp.le.s32.totalorder 2, %s12
      // Predicated region
      $region41: #{tpu_custom_call.1} parent=5 // pred_check
        %p666 = pneg %p665
      $region42: #{tpu_custom_call.1} parent=5 // pred_check_branch
        %668 = sbr.rel (%p666) target = $region44
      $region43: #{tpu_custom_call.1} parent=5 // pred_region
        %s669 = ssub.s32 %s12, 2
        // Predicated region
        $region45: #{tpu_custom_call.1} parent=43 // pred_check
          %p670 = pneg %p109
        $region46: #{tpu_custom_call.1} parent=43 // pred_check_branch
          %672 = sbr.rel (%p670) target = $region48
        $region47: #{tpu_custom_call.1} parent=43 // pred_region
          %p673 = scmp.lt.s32.totalorder %s18, 1
          %s674 = scalar_select %p673, %s18, 1
          %s675 = smul.addr %s674, 96
          %s676 = smul.addr %s675, 8
          %s677 = scalar_lea.vmem %s3, %s676
        $region48: #{tpu_custom_call.1} parent=43 // pred_fallthru
          _
      $region44: #{tpu_custom_call.1} parent=5 // pred_fallthru
        _
    $region6: #{tpu_custom_call.1} parent=1 // loop_footer
      %s16 = sadd.s32 1, %s12
    $region7: #{tpu_custom_call.1} parent=1 // loop_footer_branch
      %11 = sbr.rel target = $region3
    $region8: #{tpu_custom_call.1} parent=1 // loop_exit
      _
    %678 = vsyncpa [#allocation4], 1
    %s679 = scalar_lea.sflag [#allocation4], 1
    %680 = vsyncpa %s679, 1

// kernel: tpu_custom_call.1
$region0: #{tpu_custom_call.1}
  #allocation0 [shape = 'u32[]', space=smem, size = 0x4, offset = 0x4, fixed_abs, tag = 'smem constant byte address 0x4 - core index']
  #allocation1 [shape = 'u32[144,128]{1,0:T(1,128)}', space=vmem, size = 0x12000, scoped, tag = 'internal scratch']
  #allocation2 [shape = 'f32[8,256]{1,0:T(8,128)}', space=vmem, size = 0x2000, scoped, tag = 'scratch operand']
  %s0 = inlined_call_operand.hbm [shape: f32[2,24,256], index: 0, kind: input, shape index: {}]
  %s1 = inlined_call_operand.vmem [shape: f32[2,256], index: 1, kind: input, shape index: {}]
  %s2 = inlined_call_operand.vmem [shape: f32[6,1], index: 2, kind: input, shape index: {}]
  %s3 = inlined_call_operand.vmem [shape: f32[2,768,8], index: 3, kind: output, shape index: {}]
  %s4 = sld [smem:[#allocation0]]
  $region49: #{tpu_custom_call.1} parent=0
    _
  %s6 = ssub.s32 1, %s4
  %s7 = scalar_select 0, %s6, %s4
  $region1: #{tpu_custom_call.1} parent=0
    #allocation3 [shape = 'u8[49152]{0}', space=vmem, size = 0xc000, scoped, tag = 'input window, operand 0']
    #allocation4 [shape = 's32[2]{0}', space=sflag, size = 0x8, scoped, tag = 'scoped memory for tpu_custom_call.1']
    %8 = vsyncpa [#allocation4], 0
    %s9 = scalar_lea.sflag [#allocation4], 1
    %10 = vsyncpa %s9, 0
    loop: start=0, step=1, limit=4
    $region2: #{tpu_custom_call.1} parent=1 // loop_pre_header
      _
    $region3: #{tpu_custom_call.1} parent=1 // loop_header
      %s12 = sphi 0, %s16
      %p13 = scmp.ge.s32.totalorder %s12, 4
      %s22 = sphi 0, %s24
      %s25 = sphi 0, %s22
      %s26 = sphi 0, %s25
      %s42 = sphi 0, %s26
      %s46 = sphi 0, %s46
      %s48 = sphi 0, %s46
      %s49 = sphi 0, %s48
      %s63 = sphi 0, %s49
      %s67 = sphi 0, %s67
      %s69 = sphi 0, %s67
      %s70 = sphi 0, %s69
      %s84 = sphi 0, %s70
      %s90 = sphi 0, %s92
      %s93 = sphi 0, %s90
      %s94 = sphi 0, %s93
      %s110 = sphi 0, %s94
    $region4: #{tpu_custom_call.1} parent=1 // loop_header_branch
      %15 = sbr.rel (%p13) target = $region8
    $region5: #{tpu_custom_call.1} parent=1 // loop_body
      %s17 = ssub.s32 %s12, 1
      %s18 = ssub.s32 %s12, 2
      %s19 = sadd.s32 %s12, 1
      %s20 = ssub.s32 %s12, %s19
      %p21 = scmp.eq.s32.totalorder %s20, 0
      %s23 = sadd.s32 %s22, 1
      %s24 = scalar_select %p21, %s22, %s23
      %p27 = pneg %p21
      %p28 = scmp.eq.s32.totalorder %s12, 1
      %p29 = por %p27, %p28
      %p30 = scmp.ne.s32.totalorder %s22, %s25
      %p31 = scmp.eq.s32.totalorder %s12, 0
      %p32 = por %p30, %p31
      %p33 = scmp.ne.s32.totalorder %s22, %s25
      %p34 = scmp.eq.s32.totalorder %s17, 1
      %p35 = por %p33, %p34
      %p36 = scmp.ne.s32.totalorder %s25, %s26
      %p37 = scmp.eq.s32.totalorder %s17, 0
      %p38 = por %p36, %p37
      %p39 = scmp.ne.s32.totalorder %s25, %s26
      %p40 = scmp.eq.s32.totalorder %s18, 1
      %p41 = por %p39, %p40
      %p43 = scmp.ne.s32.totalorder %s26, %s42
      %p44 = scmp.eq.s32.totalorder %s18, 0
      %p45 = por %p43, %p44
      %s47 = sadd.s32 %s46, 1
      %p50 = scmp.eq.s32.totalorder %s12, 1
      %p51 = scmp.ne.s32.totalorder %s46, %s48
      %p52 = scmp.eq.s32.totalorder %s12, 0
      %p53 = por %p51, %p52
      %p54 = scmp.ne.s32.totalorder %s46, %s48
      %p55 = scmp.eq.s32.totalorder %s17, 1
      %p56 = por %p54, %p55
      %p57 = scmp.ne.s32.totalorder %s48, %s49
      %p58 = scmp.eq.s32.totalorder %s17, 0
      %p59 = por %p57, %p58
      %p60 = scmp.ne.s32.totalorder %s48, %s49
      %p61 = scmp.eq.s32.totalorder %s18, 1
      %p62 = por %p60, %p61
      %p64 = scmp.ne.s32.totalorder %s49, %s63
      %p65 = scmp.eq.s32.totalorder %s18, 0
      %p66 = por %p64, %p65
      %s68 = sadd.s32 %s67, 1
      %p71 = scmp.eq.s32.totalorder %s12, 1
      %p72 = scmp.ne.s32.totalorder %s67, %s69
      %p73 = scmp.eq.s32.totalorder %s12, 0
      %p74 = por %p72, %p73
      %p75 = scmp.ne.s32.totalorder %s67, %s69
      %p76 = scmp.eq.s32.totalorder %s17, 1
      %p77 = por %p75, %p76
      %p78 = scmp.ne.s32.totalorder %s69, %s70
      %p79 = scmp.eq.s32.totalorder %s17, 0
      %p80 = por %p78, %p79
      %p81 = scmp.ne.s32.totalorder %s69, %s70
      %p82 = scmp.eq.s32.totalorder %s18, 1
      %p83 = por %p81, %p82
      %p85 = scmp.ne.s32.totalorder %s70, %s84
      %p86 = scmp.eq.s32.totalorder %s18, 0
      %p87 = por %p85, %p86
      %s88 = ssub.s32 %s12, %s19
      %p89 = scmp.eq.s32.totalorder %s88, 0
      %s91 = sadd.s32 %s90, 1
      %s92 = scalar_select %p89, %s90, %s91
      %p95 = pneg %p89
      %p96 = scmp.eq.s32.totalorder %s12, 1
      %p97 = por %p95, %p96
      %p98 = scmp.ne.s32.totalorder %s90, %s93
      %p99 = scmp.eq.s32.totalorder %s12, 0
      %p100 = por %p98, %p99
      %p101 = scmp.ne.s32.totalorder %s90, %s93
      %p102 = scmp.eq.s32.totalorder %s17, 1
      %p103 = por %p101, %p102
      %p104 = scmp.ne.s32.totalorder %s93, %s94
      %p105 = scmp.eq.s32.totalorder %s17, 0
      %p106 = por %p104, %p105
      %p107 = scmp.ne.s32.totalorder %s93, %s94
      %p108 = scmp.eq.s32.totalorder %s18, 1
      %p109 = por %p107, %p108
      %p111 = scmp.ne.s32.totalorder %s94, %s110
      %p112 = scmp.eq.s32.totalorder %s18, 0
      %p113 = por %p111, %p112
      %p114 = scmp.le.s32.totalorder 1, %s12
      %p115 = scmp.lt.s32.totalorder %s12, 3
      %p116 = pnand %p114, %p115
      %p117 = pneg %p116
      // Predicated region
      $region9: #{tpu_custom_call.1} parent=5 // pred_check
        _
      $region10: #{tpu_custom_call.1} parent=5 // pred_check_branch
        %119 = sbr.rel (%p116) target = $region12
      $region11: #{tpu_custom_call.1} parent=5 // pred_region
        %s120 = ssub.s32 %s12, 1
        // Predicated region
        $region13: #{tpu_custom_call.1} parent=11 // pred_check
          %p121 = pneg %p59
        $region14: #{tpu_custom_call.1} parent=11 // pred_check_branch
          %123 = sbr.rel (%p121) target = $region16
        $region15: #{tpu_custom_call.1} parent=11 // pred_region
          _
        $region16: #{tpu_custom_call.1} parent=11 // pred_fallthru
          _
        // Predicated region
        $region17: #{tpu_custom_call.1} parent=11 // pred_check
          %p124 = pneg %p80
        $region18: #{tpu_custom_call.1} parent=11 // pred_check_branch
          %126 = sbr.rel (%p124) target = $region20
        $region19: #{tpu_custom_call.1} parent=11 // pred_region
          _
        $region20: #{tpu_custom_call.1} parent=11 // pred_fallthru
          _
      $region12: #{tpu_custom_call.1} parent=5 // pred_fallthru
        _
      %p127 = scmp.lt.s32.totalorder %s12, 2
      // Predicated region
      $region21: #{tpu_custom_call.1} parent=5 // pred_check
        %p128 = pneg %p127
      $region22: #{tpu_custom_call.1} parent=5 // pred_check_branch
        %130 = sbr.rel (%p128) target = $region24
      $region23: #{tpu_custom_call.1} parent=5 // pred_region
        // Predicated region
        $region25: #{tpu_custom_call.1} parent=23 // pred_check
          %p131 = pneg %p32
        $region26: #{tpu_custom_call.1} parent=23 // pred_check_branch
          %133 = sbr.rel (%p131) target = $region28
        $region27: #{tpu_custom_call.1} parent=23 // pred_region
          %s134 = sand.u32 %s22, 1
          %s135 = scalar_lea.sflag [#allocation4], %s134
          %s136 = sand.u32 %s22, 1
          %s137 = smul.addr %s136, 48
          %s138 = scalar_lea.vmem [#allocation3], %s137
          %s140 = ssub.s32 768, 768
          %141 = vsyncadd %s135, %s140
          %s142 = smul.addr %s12, 6
          %s143 = smul.addr %s142, 128
          %s144 = scalar_lea.hbm %s0, %s143
          %s145 = sshll.u32 %s138, 4
          %s146 = int_to_ptr.vmem [resolvable:$true] %s145
          %151 = dma.hbm_to_vmem [thread:$0]  %s144, 768, %s146, %s135, 256, 256, 16
        $region28: #{tpu_custom_call.1} parent=23 // pred_fallthru
          _
      $region24: #{tpu_custom_call.1} parent=5 // pred_fallthru
        _
      %p152 = scmp.le.s32.totalorder 1, %s12
      %p153 = scmp.lt.s32.totalorder %s12, 3
      %p154 = pnand %p152, %p153
      %p155 = pneg %p154
      // Predicated region
      $region29: #{tpu_custom_call.1} parent=5 // pred_check
        _
      $region30: #{tpu_custom_call.1} parent=5 // pred_check_branch
        %157 = sbr.rel (%p154) target = $region32
      $region31: #{tpu_custom_call.1} parent=5 // pred_region
        %s158 = ssub.s32 %s12, 1
        %s159 = sand.u32 %s25, 1
        %s160 = scalar_lea.sflag [#allocation4], %s159
        %s161 = sand.u32 %s25, 1
        %s162 = smul.addr %s161, 48
        %s163 = scalar_lea.vmem [#allocation3], %s162
        // Predicated region
        $region33: #{tpu_custom_call.1} parent=31 // pred_check
          %p164 = pneg %p38
        $region34: #{tpu_custom_call.1} parent=31 // pred_check_branch
          %166 = sbr.rel (%p164) target = $region36
        $region35: #{tpu_custom_call.1} parent=31 // pred_region
          %167 = dma.done %s160, 768
        $region36: #{tpu_custom_call.1} parent=31 // pred_fallthru
          _
        %s168 = sand.u32 %s25, 1
        %s169 = scalar_lea.sflag [#allocation4], %s168
        %s170 = sand.u32 %s25, 1
        %s171 = smul.addr %s170, 48
        %s172 = scalar_lea.vmem [#allocation3], %s171
        %p173 = pneg %p38
        %p174 = pneg %p35
        %p175 = pneg %p59
        %p176 = pneg %p56
        %p177 = pneg %p80
        %p178 = pneg %p77
        %p179 = pneg %p106
        %p180 = pneg %p103
        %p181 = scmp.lt.s32.totalorder %s17, 1
        %s182 = scalar_select %p181, %s17, 1
        %s183 = smul.addr %s182, 96
        %s184 = smul.addr %s183, 8
        %s185 = scalar_lea.vmem %s3, %s184
        %p186 = scmp.lt.s32.totalorder %s17, 1
        %s187 = scalar_select %p186, %s17, 1
        %s188 = smul.addr %s187, 96
        %s189 = smul.addr %s188, 8
        %s190 = scalar_lea.vmem %s3, %s189
        %v191 = vld [vmem:[%s1] sm:$0xf]
        %v192 = vld [vmem:[%s163] sm:$0x3]
        %v193 = vld [vmem:[%s163 + $0x8] sm:$0x3]
        %v194 = vld [vmem:[%s163] sm:$0xc]
        %v195 = vld [vmem:[%s163 + $0x8] sm:$0xc]
        %v196 = vld [vmem:[%s163] sm:$0xf0]
        %v197 = vld [vmem:[%s163 + $0x8] sm:$0xf0]
        %v198 = vxor.u32 %v192, 2147483648
        %v199 = vxor.u32 %v193, 2147483648
        %v200 = vmul.f32 %v198, 1.442695
        %v201 = vpow.pop %v200
        %v202 = vmul.f32 %v199, 1.442695
        %v203 = vpow.pop %v202
        %v204 = vadd.f32 %v201, 1.0
        %v205 = vadd.f32 %v203, 1.0
        %v206 = vrcp.pop %v204
        %v207 = vmul.f32 1.0, %v206
        %v208 = vrcp.pop %v205
        %v209 = vmul.f32 1.0, %v208
        %v210 = vmul.f32 %v207, 4.0
        %v211 = vmul.f32 %v209, 4.0
        %v214 = vunpack.c.l.s4 1983009808
        %v215 = vunpack.c.0.s8 %v214
        %v216 = vlaneseq
        %v217 = vshrl.u32 %v216, 7
        %v218 = vsub.s32 %v215, %v217
        %v219 = vrot.slane %v191, %v218
        %v220 = vcombine.high %v219, %v219
        %v223 = vadd.f32 %v210, %v219
        %v224 = vadd.f32 %v211, %v220
        %v225 = vmul.f32 %v194, 1.442695
        %v226 = vpow.pop %v225
        %v227 = vmul.f32 %v195, 1.442695
        %v228 = vpow.pop %v227
        %v229 = vld [vmem:[%s2] sm:$0x3]
        %231 = vset.pattern.permute.xlu0 0
        %232 = vperm.xlu0 %231, %v229
        %v233 = vpop.permute.xlu0 %232
        %v234 = vrot.slane %v233, 6
        %v236 = vmul.f32 %v226, %v234
        %v237 = vmul.f32 %v228, %v234
        %v238 = vxor.u32 %v196, 2147483648
        %v239 = vxor.u32 %v197, 2147483648
        %v240 = vmul.f32 %v238, 1.442695
        %v241 = vpow.pop %v240
        %v242 = vmul.f32 %v239, 1.442695
        %v243 = vpow.pop %v242
        %v244 = vadd.f32 %v241, 1.0
        %v245 = vadd.f32 %v243, 1.0
        %v246 = vrcp.pop %v244
        %v247 = vmul.f32 1.0, %v246
        %v248 = vrcp.pop %v245
        %v249 = vmul.f32 1.0, %v248
        %250 = vst [vmem:[#allocation2] sm:$0x3] %v223
        %251 = vst [vmem:[#allocation2 + $0x8] sm:$0x3] %v224
        %252 = vst [vmem:[#allocation2] sm:$0xc] %v236
        %253 = vst [vmem:[#allocation2 + $0x8] sm:$0xc] %v237
        %254 = vst [vmem:[#allocation2] sm:$0xf0] %v247
        %255 = vst [vmem:[#allocation2 + $0x8] sm:$0xf0] %v249
        %v256 = vld [vmem:[#allocation2] sm:$0xff]
        %v257 = vld [vmem:[#allocation2 + $0x8] sm:$0xff]
        %258 = vxpose.xlu0.b32.start [1/16] %v256, 128
        %259 = vxpose.xlu0.b32.cont [2/16] 0.0, 128
        %260 = vxpose.xlu0.b32.cont [3/16] 0.0, 128
        %261 = vxpose.xlu0.b32.cont [4/16] 0.0, 128
        %262 = vxpose.xlu0.b32.cont [5/16] 0.0, 128
        %263 = vxpose.xlu0.b32.cont [6/16] 0.0, 128
        %264 = vxpose.xlu0.b32.cont [7/16] 0.0, 128
        %265 = vxpose.xlu0.b32.cont [8/16] 0.0, 128
        %266 = vxpose.xlu0.b32.cont [9/16] 0.0, 128
        %267 = vxpose.xlu0.b32.cont [10/16] 0.0, 128
        %268 = vxpose.xlu0.b32.cont [11/16] 0.0, 128
        %269 = vxpose.xlu0.b32.cont [12/16] 0.0, 128
        %270 = vxpose.xlu0.b32.cont [13/16] 0.0, 128
        %271 = vxpose.xlu0.b32.cont [14/16] 0.0, 128
        %272 = vxpose.xlu0.b32.cont [15/16] 0.0, 128
        %273 = vxpose.xlu0.b32.end [16/16] 0.0, 128
        %v274 = vpop.trf.xlu0
        %v275 = vpop.trf.xlu0
        %v276 = vpop.trf.xlu0
        %v277 = vpop.trf.xlu0
        %v278 = vpop.trf.xlu0
        %v279 = vpop.trf.xlu0
        %v280 = vpop.trf.xlu0
        %v281 = vpop.trf.xlu0
        %v282 = vpop.trf.xlu0
        %v283 = vpop.trf.xlu0
        %v284 = vpop.trf.xlu0
        %v285 = vpop.trf.xlu0
        %v286 = vpop.trf.xlu0
        %v287 = vpop.trf.xlu0
        %v288 = vpop.trf.xlu0
        %v289 = vpop.trf.xlu0
        %290 = vxpose.xlu0.b32.start [1/16] %v257, 128
        %291 = vxpose.xlu0.b32.cont [2/16] 0.0, 128
        %292 = vxpose.xlu0.b32.cont [3/16] 0.0, 128
        %293 = vxpose.xlu0.b32.cont [4/16] 0.0, 128
        %294 = vxpose.xlu0.b32.cont [5/16] 0.0, 128
        %295 = vxpose.xlu0.b32.cont [6/16] 0.0, 128
        %296 = vxpose.xlu0.b32.cont [7/16] 0.0, 128
        %297 = vxpose.xlu0.b32.cont [8/16] 0.0, 128
        %298 = vxpose.xlu0.b32.cont [9/16] 0.0, 128
        %299 = vxpose.xlu0.b32.cont [10/16] 0.0, 128
        %300 = vxpose.xlu0.b32.cont [11/16] 0.0, 128
        %301 = vxpose.xlu0.b32.cont [12/16] 0.0, 128
        %302 = vxpose.xlu0.b32.cont [13/16] 0.0, 128
        %303 = vxpose.xlu0.b32.cont [14/16] 0.0, 128
        %304 = vxpose.xlu0.b32.cont [15/16] 0.0, 128
        %305 = vxpose.xlu0.b32.end [16/16] 0.0, 128
        %v306 = vpop.trf.xlu0
        %v307 = vpop.trf.xlu0
        %v308 = vpop.trf.xlu0
        %v309 = vpop.trf.xlu0
        %v310 = vpop.trf.xlu0
        %v311 = vpop.trf.xlu0
        %v312 = vpop.trf.xlu0
        %v313 = vpop.trf.xlu0
        %v314 = vpop.trf.xlu0
        %v315 = vpop.trf.xlu0
        %v316 = vpop.trf.xlu0
        %v317 = vpop.trf.xlu0
        %v318 = vpop.trf.xlu0
        %v319 = vpop.trf.xlu0
        %v320 = vpop.trf.xlu0
        %v321 = vpop.trf.xlu0
        %vm322 = vcmask 64512
        %323 = vst.msk [vmem:[%s190] sm:$0xff] %vm322, %v274
        %324 = vst.msk [vmem:[%s190 + $0x8] sm:$0xff] %vm322, %v275
        %325 = vst.msk [vmem:[%s190 + $0x10] sm:$0xff] %vm322, %v276
        %326 = vst.msk [vmem:[%s190 + $0x18] sm:$0xff] %vm322, %v277
        %327 = vst.msk [vmem:[%s190 + $0x20] sm:$0xff] %vm322, %v278
        %328 = vst.msk [vmem:[%s190 + $0x28] sm:$0xff] %vm322, %v279
        %329 = vst.msk [vmem:[%s190 + $0x30] sm:$0xff] %vm322, %v280
        %330 = vst.msk [vmem:[%s190 + $0x38] sm:$0xff] %vm322, %v281
        %331 = vst.msk [vmem:[%s190 + $0x40] sm:$0xff] %vm322, %v282
        %332 = vst.msk [vmem:[%s190 + $0x48] sm:$0xff] %vm322, %v283
        %333 = vst.msk [vmem:[%s190 + $0x50] sm:$0xff] %vm322, %v284
        %334 = vst.msk [vmem:[%s190 + $0x58] sm:$0xff] %vm322, %v285
        %335 = vst.msk [vmem:[%s190 + $0x60] sm:$0xff] %vm322, %v286
        %336 = vst.msk [vmem:[%s190 + $0x68] sm:$0xff] %vm322, %v287
        %337 = vst.msk [vmem:[%s190 + $0x70] sm:$0xff] %vm322, %v288
        %338 = vst.msk [vmem:[%s190 + $0x78] sm:$0xff] %vm322, %v289
        %339 = vst.msk [vmem:[%s190 + $0x80] sm:$0xff] %vm322, %v306
        %340 = vst.msk [vmem:[%s190 + $0x88] sm:$0xff] %vm322, %v307
        %341 = vst.msk [vmem:[%s190 + $0x90] sm:$0xff] %vm322, %v308
        %342 = vst.msk [vmem:[%s190 + $0x98] sm:$0xff] %vm322, %v309
        %343 = vst.msk [vmem:[%s190 + $0xa0] sm:$0xff] %vm322, %v310
        %344 = vst.msk [vmem:[%s190 + $0xa8] sm:$0xff] %vm322, %v311
        %345 = vst.msk [vmem:[%s190 + $0xb0] sm:$0xff] %vm322, %v312
        %346 = vst.msk [vmem:[%s190 + $0xb8] sm:$0xff] %vm322, %v313
        %347 = vst.msk [vmem:[%s190 + $0xc0] sm:$0xff] %vm322, %v314
        %348 = vst.msk [vmem:[%s190 + $0xc8] sm:$0xff] %vm322, %v315
        %349 = vst.msk [vmem:[%s190 + $0xd0] sm:$0xff] %vm322, %v316
        %350 = vst.msk [vmem:[%s190 + $0xd8] sm:$0xff] %vm322, %v317
        %351 = vst.msk [vmem:[%s190 + $0xe0] sm:$0xff] %vm322, %v318
        %352 = vst.msk [vmem:[%s190 + $0xe8] sm:$0xff] %vm322, %v319
        %353 = vst.msk [vmem:[%s190 + $0xf0] sm:$0xff] %vm322, %v320
        %354 = vst.msk [vmem:[%s190 + $0xf8] sm:$0xff] %vm322, %v321
        %v355 = vld [vmem:[%s163 + $0x10] sm:$0x3]
        %v356 = vld [vmem:[%s163 + $0x18] sm:$0x3]
        %v357 = vld [vmem:[%s163 + $0x10] sm:$0xc]
        %v358 = vld [vmem:[%s163 + $0x18] sm:$0xc]
        %v359 = vld [vmem:[%s163 + $0x10] sm:$0xf0]
        %v360 = vld [vmem:[%s163 + $0x18] sm:$0xf0]
        %v361 = vxor.u32 %v355, 2147483648
        %v362 = vxor.u32 %v356, 2147483648
        %v363 = vmul.f32 %v361, 1.442695
        %v364 = vpow.pop %v363
        %v365 = vmul.f32 %v362, 1.442695
        %v366 = vpow.pop %v365
        %v367 = vadd.f32 %v364, 1.0
        %v368 = vadd.f32 %v366, 1.0
        %v369 = vrcp.pop %v367
        %v370 = vmul.f32 1.0, %v369
        %v371 = vrcp.pop %v368
        %v372 = vmul.f32 1.0, %v371
        %v373 = vmul.f32 %v370, 4.0
        %v374 = vmul.f32 %v372, 4.0
        %v375 = vadd.f32 %v373, %v219
        %v376 = vadd.f32 %v374, %v220
        %v377 = vmul.f32 %v357, 1.442695
        %v378 = vpow.pop %v377
        %v379 = vmul.f32 %v358, 1.442695
        %v380 = vpow.pop %v379
        %v381 = vld [vmem:[%s2 + $0x2] sm:$0x3]
        %383 = vset.pattern.permute.xlu0 0
        %384 = vperm.xlu0 %383, %v381
        %v385 = vpop.permute.xlu0 %384
        %v386 = vrot.slane %v385, 6
        %v388 = vmul.f32 %v378, %v386
        %v389 = vmul.f32 %v380, %v386
        %v390 = vxor.u32 %v359, 2147483648
        %v391 = vxor.u32 %v360, 2147483648
        %v392 = vmul.f32 %v390, 1.442695
        %v393 = vpow.pop %v392
        %v394 = vmul.f32 %v391, 1.442695
        %v395 = vpow.pop %v394
        %v396 = vadd.f32 %v393, 1.0
        %v397 = vadd.f32 %v395, 1.0
        %v398 = vrcp.pop %v396
        %v399 = vmul.f32 1.0, %v398
        %v400 = vrcp.pop %v397
        %v401 = vmul.f32 1.0, %v400
        %402 = vst [vmem:[#allocation2] sm:$0x3] %v375
        %403 = vst [vmem:[#allocation2 + $0x8] sm:$0x3] %v376
        %404 = vst [vmem:[#allocation2] sm:$0xc] %v388
        %405 = vst [vmem:[#allocation2 + $0x8] sm:$0xc] %v389
        %406 = vst [vmem:[#allocation2] sm:$0xf0] %v399
        %407 = vst [vmem:[#allocation2 + $0x8] sm:$0xf0] %v401
        %v408 = vld [vmem:[#allocation2] sm:$0xff]
        %v409 = vld [vmem:[#allocation2 + $0x8] sm:$0xff]
        %410 = vxpose.xlu0.b32.start [1/16] %v408, 128
        %411 = vxpose.xlu0.b32.cont [2/16] 0.0, 128
        %412 = vxpose.xlu0.b32.cont [3/16] 0.0, 128
        %413 = vxpose.xlu0.b32.cont [4/16] 0.0, 128
        %414 = vxpose.xlu0.b32.cont [5/16] 0.0, 128
        %415 = vxpose.xlu0.b32.cont [6/16] 0.0, 128
        %416 = vxpose.xlu0.b32.cont [7/16] 0.0, 128
        %417 = vxpose.xlu0.b32.cont [8/16] 0.0, 128
        %418 = vxpose.xlu0.b32.cont [9/16] 0.0, 128
        %419 = vxpose.xlu0.b32.cont [10/16] 0.0, 128
        %420 = vxpose.xlu0.b32.cont [11/16] 0.0, 128
        %421 = vxpose.xlu0.b32.cont [12/16] 0.0, 128
        %422 = vxpose.xlu0.b32.cont [13/16] 0.0, 128
        %423 = vxpose.xlu0.b32.cont [14/16] 0.0, 128
        %424 = vxpose.xlu0.b32.cont [15/16] 0.0, 128
        %425 = vxpose.xlu0.b32.end [16/16] 0.0, 128
        %v426 = vpop.trf.xlu0
        %v427 = vpop.trf.xlu0
        %v428 = vpop.trf.xlu0
        %v429 = vpop.trf.xlu0
        %v430 = vpop.trf.xlu0
        %v431 = vpop.trf.xlu0
        %v432 = vpop.trf.xlu0
        %v433 = vpop.trf.xlu0
        %v434 = vpop.trf.xlu0
        %v435 = vpop.trf.xlu0
        %v436 = vpop.trf.xlu0
        %v437 = vpop.trf.xlu0
        %v438 = vpop.trf.xlu0
        %v439 = vpop.trf.xlu0
        %v440 = vpop.trf.xlu0
        %v441 = vpop.trf.xlu0
        %442 = vxpose.xlu0.b32.start [1/16] %v409, 128
        %443 = vxpose.xlu0.b32.cont [2/16] 0.0, 128
        %444 = vxpose.xlu0.b32.cont [3/16] 0.0, 128
        %445 = vxpose.xlu0.b32.cont [4/16] 0.0, 128
        %446 = vxpose.xlu0.b32.cont [5/16] 0.0, 128
        %447 = vxpose.xlu0.b32.cont [6/16] 0.0, 128
        %448 = vxpose.xlu0.b32.cont [7/16] 0.0, 128
        %449 = vxpose.xlu0.b32.cont [8/16] 0.0, 128
        %450 = vxpose.xlu0.b32.cont [9/16] 0.0, 128
        %451 = vxpose.xlu0.b32.cont [10/16] 0.0, 128
        %452 = vxpose.xlu0.b32.cont [11/16] 0.0, 128
        %453 = vxpose.xlu0.b32.cont [12/16] 0.0, 128
        %454 = vxpose.xlu0.b32.cont [13/16] 0.0, 128
        %455 = vxpose.xlu0.b32.cont [14/16] 0.0, 128
        %456 = vxpose.xlu0.b32.cont [15/16] 0.0, 128
        %457 = vxpose.xlu0.b32.end [16/16] 0.0, 128
        %v458 = vpop.trf.xlu0
        %v459 = vpop.trf.xlu0
        %v460 = vpop.trf.xlu0
        %v461 = vpop.trf.xlu0
        %v462 = vpop.trf.xlu0
        %v463 = vpop.trf.xlu0
        %v464 = vpop.trf.xlu0
        %v465 = vpop.trf.xlu0
        %v466 = vpop.trf.xlu0
        %v467 = vpop.trf.xlu0
        %v468 = vpop.trf.xlu0
        %v469 = vpop.trf.xlu0
        %v470 = vpop.trf.xlu0
        %v471 = vpop.trf.xlu0
        %v472 = vpop.trf.xlu0
        %v473 = vpop.trf.xlu0
        %474 = vst.msk [vmem:[%s190 + $0x100] sm:$0xff] %vm322, %v426
        %475 = vst.msk [vmem:[%s190 + $0x108] sm:$0xff] %vm322, %v427
        %476 = vst.msk [vmem:[%s190 + $0x110] sm:$0xff] %vm322, %v428
        %477 = vst.msk [vmem:[%s190 + $0x118] sm:$0xff] %vm322, %v429
        %478 = vst.msk [vmem:[%s190 + $0x120] sm:$0xff] %vm322, %v430
        %479 = vst.msk [vmem:[%s190 + $0x128] sm:$0xff] %vm322, %v431
        %480 = vst.msk [vmem:[%s190 + $0x130] sm:$0xff] %vm322, %v432
        %481 = vst.msk [vmem:[%s190 + $0x138] sm:$0xff] %vm322, %v433
        %482 = vst.msk [vmem:[%s190 + $0x140] sm:$0xff] %vm322, %v434
        %483 = vst.msk [vmem:[%s190 + $0x148] sm:$0xff] %vm322, %v435
        %484 = vst.msk [vmem:[%s190 + $0x150] sm:$0xff] %vm322, %v436
        %485 = vst.msk [vmem:[%s190 + $0x158] sm:$0xff] %vm322, %v437
        %486 = vst.msk [vmem:[%s190 + $0x160] sm:$0xff] %vm322, %v438
        %487 = vst.msk [vmem:[%s190 + $0x168] sm:$0xff] %vm322, %v439
        %488 = vst.msk [vmem:[%s190 + $0x170] sm:$0xff] %vm322, %v440
        %489 = vst.msk [vmem:[%s190 + $0x178] sm:$0xff] %vm322, %v441
        %490 = vst.msk [vmem:[%s190 + $0x180] sm:$0xff] %vm322, %v458
        %491 = vst.msk [vmem:[%s190 + $0x188] sm:$0xff] %vm322, %v459
        %492 = vst.msk [vmem:[%s190 + $0x190] sm:$0xff] %vm322, %v460
        %493 = vst.msk [vmem:[%s190 + $0x198] sm:$0xff] %vm322, %v461
        %494 = vst.msk [vmem:[%s190 + $0x1a0] sm:$0xff] %vm322, %v462
        %495 = vst.msk [vmem:[%s190 + $0x1a8] sm:$0xff] %vm322, %v463
        %496 = vst.msk [vmem:[%s190 + $0x1b0] sm:$0xff] %vm322, %v464
        %497 = vst.msk [vmem:[%s190 + $0x1b8] sm:$0xff] %vm322, %v465
        %498 = vst.msk [vmem:[%s190 + $0x1c0] sm:$0xff] %vm322, %v466
        %499 = vst.msk [vmem:[%s190 + $0x1c8] sm:$0xff] %vm322, %v467
        %500 = vst.msk [vmem:[%s190 + $0x1d0] sm:$0xff] %vm322, %v468
        %501 = vst.msk [vmem:[%s190 + $0x1d8] sm:$0xff] %vm322, %v469
        %502 = vst.msk [vmem:[%s190 + $0x1e0] sm:$0xff] %vm322, %v470
        %503 = vst.msk [vmem:[%s190 + $0x1e8] sm:$0xff] %vm322, %v471
        %504 = vst.msk [vmem:[%s190 + $0x1f0] sm:$0xff] %vm322, %v472
        %505 = vst.msk [vmem:[%s190 + $0x1f8] sm:$0xff] %vm322, %v473
        %v506 = vld [vmem:[%s163 + $0x20] sm:$0x3]
        %v507 = vld [vmem:[%s163 + $0x28] sm:$0x3]
        %v508 = vld [vmem:[%s163 + $0x20] sm:$0xc]
        %v509 = vld [vmem:[%s163 + $0x28] sm:$0xc]
        %v510 = vld [vmem:[%s163 + $0x20] sm:$0xf0]
        %v511 = vld [vmem:[%s163 + $0x28] sm:$0xf0]
        %v512 = vxor.u32 %v506, 2147483648
        %v513 = vxor.u32 %v507, 2147483648
        %v514 = vmul.f32 %v512, 1.442695
        %v515 = vpow.pop %v514
        %v516 = vmul.f32 %v513, 1.442695
        %v517 = vpow.pop %v516
        %v518 = vadd.f32 %v515, 1.0
        %v519 = vadd.f32 %v517, 1.0
        %v520 = vrcp.pop %v518
        %v521 = vmul.f32 1.0, %v520
        %v522 = vrcp.pop %v519
        %v523 = vmul.f32 1.0, %v522
        %v524 = vmul.f32 %v521, 4.0
        %v525 = vmul.f32 %v523, 4.0
        %v526 = vadd.f32 %v524, %v219
        %v527 = vadd.f32 %v525, %v220
        %v528 = vmul.f32 %v508, 1.442695
        %v529 = vpow.pop %v528
        %v530 = vmul.f32 %v509, 1.442695
        %v531 = vpow.pop %v530
        %v532 = vld [vmem:[%s2 + $0x4] sm:$0x3]
        %534 = vset.pattern.permute.xlu0 0
        %535 = vperm.xlu0 %534, %v532
        %v536 = vpop.permute.xlu0 %535
        %v537 = vrot.slane %v536, 6
        %v539 = vmul.f32 %v529, %v537
        %v540 = vmul.f32 %v531, %v537
        %v541 = vxor.u32 %v510, 2147483648
        %v542 = vxor.u32 %v511, 2147483648
        %v543 = vmul.f32 %v541, 1.442695
        %v544 = vpow.pop %v543
        %v545 = vmul.f32 %v542, 1.442695
        %v546 = vpow.pop %v545
        %v547 = vadd.f32 %v544, 1.0
        %v548 = vadd.f32 %v546, 1.0
        %v549 = vrcp.pop %v547
        %v550 = vmul.f32 1.0, %v549
        %v551 = vrcp.pop %v548
        %v552 = vmul.f32 1.0, %v551
        %553 = vst [vmem:[#allocation2] sm:$0x3] %v526
        %554 = vst [vmem:[#allocation2 + $0x8] sm:$0x3] %v527
        %555 = vst [vmem:[#allocation2] sm:$0xc] %v539
        %556 = vst [vmem:[#allocation2 + $0x8] sm:$0xc] %v540
        %557 = vst [vmem:[#allocation2] sm:$0xf0] %v550
        %558 = vst [vmem:[#allocation2 + $0x8] sm:$0xf0] %v552
        %v559 = vld [vmem:[#allocation2] sm:$0xff]
        %v560 = vld [vmem:[#allocation2 + $0x8] sm:$0xff]
        %561 = vxpose.xlu0.b32.start [1/16] %v559, 128
        %562 = vxpose.xlu0.b32.cont [2/16] 0.0, 128
        %563 = vxpose.xlu0.b32.cont [3/16] 0.0, 128
        %564 = vxpose.xlu0.b32.cont [4/16] 0.0, 128
        %565 = vxpose.xlu0.b32.cont [5/16] 0.0, 128
        %566 = vxpose.xlu0.b32.cont [6/16] 0.0, 128
        %567 = vxpose.xlu0.b32.cont [7/16] 0.0, 128
        %568 = vxpose.xlu0.b32.cont [8/16] 0.0, 128
        %569 = vxpose.xlu0.b32.cont [9/16] 0.0, 128
        %570 = vxpose.xlu0.b32.cont [10/16] 0.0, 128
        %571 = vxpose.xlu0.b32.cont [11/16] 0.0, 128
        %572 = vxpose.xlu0.b32.cont [12/16] 0.0, 128
        %573 = vxpose.xlu0.b32.cont [13/16] 0.0, 128
        %574 = vxpose.xlu0.b32.cont [14/16] 0.0, 128
        %575 = vxpose.xlu0.b32.cont [15/16] 0.0, 128
        %576 = vxpose.xlu0.b32.end [16/16] 0.0, 128
        %v577 = vpop.trf.xlu0
        %v578 = vpop.trf.xlu0
        %v579 = vpop.trf.xlu0
        %v580 = vpop.trf.xlu0
        %v581 = vpop.trf.xlu0
        %v582 = vpop.trf.xlu0
        %v583 = vpop.trf.xlu0
        %v584 = vpop.trf.xlu0
        %v585 = vpop.trf.xlu0
        %v586 = vpop.trf.xlu0
        %v587 = vpop.trf.xlu0
        %v588 = vpop.trf.xlu0
        %v589 = vpop.trf.xlu0
        %v590 = vpop.trf.xlu0
        %v591 = vpop.trf.xlu0
        %v592 = vpop.trf.xlu0
        %593 = vxpose.xlu0.b32.start [1/16] %v560, 128
        %594 = vxpose.xlu0.b32.cont [2/16] 0.0, 128
        %595 = vxpose.xlu0.b32.cont [3/16] 0.0, 128
        %596 = vxpose.xlu0.b32.cont [4/16] 0.0, 128
        %597 = vxpose.xlu0.b32.cont [5/16] 0.0, 128
        %598 = vxpose.xlu0.b32.cont [6/16] 0.0, 128
        %599 = vxpose.xlu0.b32.cont [7/16] 0.0, 128
        %600 = vxpose.xlu0.b32.cont [8/16] 0.0, 128
        %601 = vxpose.xlu0.b32.cont [9/16] 0.0, 128
        %602 = vxpose.xlu0.b32.cont [10/16] 0.0, 128
        %603 = vxpose.xlu0.b32.cont [11/16] 0.0, 128
        %604 = vxpose.xlu0.b32.cont [12/16] 0.0, 128
        %605 = vxpose.xlu0.b32.cont [13/16] 0.0, 128
        %606 = vxpose.xlu0.b32.cont [14/16] 0.0, 128
        %607 = vxpose.xlu0.b32.cont [15/16] 0.0, 128
        %608 = vxpose.xlu0.b32.end [16/16] 0.0, 128
        %v609 = vpop.trf.xlu0
        %v610 = vpop.trf.xlu0
        %v611 = vpop.trf.xlu0
        %v612 = vpop.trf.xlu0
        %v613 = vpop.trf.xlu0
        %v614 = vpop.trf.xlu0
        %v615 = vpop.trf.xlu0
        %v616 = vpop.trf.xlu0
        %v617 = vpop.trf.xlu0
        %v618 = vpop.trf.xlu0
        %v619 = vpop.trf.xlu0
        %v620 = vpop.trf.xlu0
        %v621 = vpop.trf.xlu0
        %v622 = vpop.trf.xlu0
        %v623 = vpop.trf.xlu0
        %v624 = vpop.trf.xlu0
        %625 = vst.msk [vmem:[%s190 + $0x200] sm:$0xff] %vm322, %v577
        %626 = vst.msk [vmem:[%s190 + $0x208] sm:$0xff] %vm322, %v578
        %627 = vst.msk [vmem:[%s190 + $0x210] sm:$0xff] %vm322, %v579
        %628 = vst.msk [vmem:[%s190 + $0x218] sm:$0xff] %vm322, %v580
        %629 = vst.msk [vmem:[%s190 + $0x220] sm:$0xff] %vm322, %v581
        %630 = vst.msk [vmem:[%s190 + $0x228] sm:$0xff] %vm322, %v582
        %631 = vst.msk [vmem:[%s190 + $0x230] sm:$0xff] %vm322, %v583
        %632 = vst.msk [vmem:[%s190 + $0x238] sm:$0xff] %vm322, %v584
        %633 = vst.msk [vmem:[%s190 + $0x240] sm:$0xff] %vm322, %v585
        %634 = vst.msk [vmem:[%s190 + $0x248] sm:$0xff] %vm322, %v586
        %635 = vst.msk [vmem:[%s190 + $0x250] sm:$0xff] %vm322, %v587
        %636 = vst.msk [vmem:[%s190 + $0x258] sm:$0xff] %vm322, %v588
        %637 = vst.msk [vmem:[%s190 + $0x260] sm:$0xff] %vm322, %v589
        %638 = vst.msk [vmem:[%s190 + $0x268] sm:$0xff] %vm322, %v590
        %639 = vst.msk [vmem:[%s190 + $0x270] sm:$0xff] %vm322, %v591
        %640 = vst.msk [vmem:[%s190 + $0x278] sm:$0xff] %vm322, %v592
        %641 = vst.msk [vmem:[%s190 + $0x280] sm:$0xff] %vm322, %v609
        %642 = vst.msk [vmem:[%s190 + $0x288] sm:$0xff] %vm322, %v610
        %643 = vst.msk [vmem:[%s190 + $0x290] sm:$0xff] %vm322, %v611
        %644 = vst.msk [vmem:[%s190 + $0x298] sm:$0xff] %vm322, %v612
        %645 = vst.msk [vmem:[%s190 + $0x2a0] sm:$0xff] %vm322, %v613
        %646 = vst.msk [vmem:[%s190 + $0x2a8] sm:$0xff] %vm322, %v614
        %647 = vst.msk [vmem:[%s190 + $0x2b0] sm:$0xff] %vm322, %v615
        %648 = vst.msk [vmem:[%s190 + $0x2b8] sm:$0xff] %vm322, %v616
        %649 = vst.msk [vmem:[%s190 + $0x2c0] sm:$0xff] %vm322, %v617
        %650 = vst.msk [vmem:[%s190 + $0x2c8] sm:$0xff] %vm322, %v618
        %651 = vst.msk [vmem:[%s190 + $0x2d0] sm:$0xff] %vm322, %v619
        %652 = vst.msk [vmem:[%s190 + $0x2d8] sm:$0xff] %vm322, %v620
        %653 = vst.msk [vmem:[%s190 + $0x2e0] sm:$0xff] %vm322, %v621
        %654 = vst.msk [vmem:[%s190 + $0x2e8] sm:$0xff] %vm322, %v622
        %655 = vst.msk [vmem:[%s190 + $0x2f0] sm:$0xff] %vm322, %v623
        %656 = vst.msk [vmem:[%s190 + $0x2f8] sm:$0xff] %vm322, %v624
        %p657 = scmp.lt.s32.totalorder %s17, 1
        %s658 = scalar_select %p657, %s17, 1
        %s659 = smul.addr %s658, 96
        %s660 = smul.addr %s659, 8
        %s661 = scalar_lea.vmem %s3, %s660
        // Predicated region
        $region37: #{tpu_custom_call.1} parent=31 // pred_check
          %p662 = pneg %p103
        $region38: #{tpu_custom_call.1} parent=31 // pred_check_branch
          %664 = sbr.rel (%p662) target = $region40
        $region39: #{tpu_custom_call.1} parent=31 // pred_region
          _
        $region40: #{tpu_custom_call.1} parent=31 // pred_fallthru
          _
      $region32: #{tpu_custom_call.1} parent=5 // pred_fallthru
        _
      %p665 = scmp.le.s32.totalorder 2, %s12
      // Predicated region
      $region41: #{tpu_custom_call.1} parent=5 // pred_check
        %p666 = pneg %p665
      $region42: #{tpu_custom_call.1} parent=5 // pred_check_branch
        %668 = sbr.rel (%p666) target = $region44
      $region43: #{tpu_custom_call.1} parent=5 // pred_region
        %s669 = ssub.s32 %s12, 2
        // Predicated region
        $region45: #{tpu_custom_call.1} parent=43 // pred_check
          %p670 = pneg %p109
        $region46: #{tpu_custom_call.1} parent=43 // pred_check_branch
          %672 = sbr.rel (%p670) target = $region48
        $region47: #{tpu_custom_call.1} parent=43 // pred_region
          %p673 = scmp.lt.s32.totalorder %s18, 1
          %s674 = scalar_select %p673, %s18, 1
          %s675 = smul.addr %s674, 96
          %s676 = smul.addr %s675, 8
          %s677 = scalar_lea.vmem %s3, %s676
        $region48: #{tpu_custom_call.1} parent=43 // pred_fallthru
          _
      $region44: #{tpu_custom_call.1} parent=5 // pred_fallthru
        _
    $region6: #{tpu_custom_call.1} parent=1 // loop_footer
      %s16 = sadd.s32 1, %s12
    $region7: #{tpu_custom_call.1} parent=1 // loop_footer_branch
      %11 = sbr.rel target = $region3
    $region8: #{tpu_custom_call.1} parent=1 // loop_exit
      _
    %678 = vsyncpa [#allocation4], 1
    %s679 = scalar_lea.sflag [#allocation4], 1
    %680 = vsyncpa %s679, 1

// kernel: tpu_custom_call.1
$region0: #{tpu_custom_call.1}
  #allocation0 [shape = 'u32[]', space=smem, size = 0x4, offset = 0x4, fixed_abs, tag = 'smem constant byte address 0x4 - core index']
  #allocation1 [shape = 'u32[144,128]{1,0:T(1,128)}', space=vmem, size = 0x12000, scoped, tag = 'internal scratch']
  %s0 = inlined_call_operand.hbm [shape: f32[2,24,256], index: 0, kind: input, shape index: {}]
  %s1 = inlined_call_operand.vmem [shape: f32[2,256], index: 1, kind: input, shape index: {}]
  %s2 = inlined_call_operand.vmem [shape: f32[6,1], index: 2, kind: input, shape index: {}]
  %s3 = inlined_call_operand.hbm [shape: f32[2,24,256], index: 3, kind: output, shape index: {}]
  %s4 = sld [smem:[#allocation0]]
  $region49: #{tpu_custom_call.1} parent=0
    _
  %s6 = ssub.s32 1, %s4
  %s7 = scalar_select 0, %s6, %s4
  $region1: #{tpu_custom_call.1} parent=0
    #allocation2 [shape = 'u8[49152]{0}', space=vmem, size = 0xc000, scoped, tag = 'input window, operand 0']
    #allocation3 [shape = 's32[2]{0}', space=sflag, size = 0x8, scoped, tag = 'scoped memory for tpu_custom_call.1']
    #allocation4 [shape = 's32[2]{0}', space=sflag, size = 0x8, scoped, tag = 'scoped memory for tpu_custom_call.1']
    #allocation5 [shape = 'u8[49152]{0}', space=vmem, size = 0xc000, scoped, tag = 'output window, operand 0']
    %8 = vsyncpa [#allocation3], 0
    %s9 = scalar_lea.sflag [#allocation3], 1
    %10 = vsyncpa %s9, 0
    %11 = vsyncpa [#allocation4], 0
    %s12 = scalar_lea.sflag [#allocation4], 1
    %13 = vsyncpa %s12, 0
    loop: start=0, step=1, limit=4
    $region2: #{tpu_custom_call.1} parent=1 // loop_pre_header
      _
    $region3: #{tpu_custom_call.1} parent=1 // loop_header
      %s15 = sphi 0, %s19
      %p16 = scmp.ge.s32.totalorder %s15, 4
      %s25 = sphi 0, %s27
      %s28 = sphi 0, %s25
      %s29 = sphi 0, %s28
      %s45 = sphi 0, %s29
      %s49 = sphi 0, %s49
      %s51 = sphi 0, %s49
      %s52 = sphi 0, %s51
      %s66 = sphi 0, %s52
      %s70 = sphi 0, %s70
      %s72 = sphi 0, %s70
      %s73 = sphi 0, %s72
      %s87 = sphi 0, %s73
      %s93 = sphi 0, %s95
      %s96 = sphi 0, %s93
      %s97 = sphi 0, %s96
      %s113 = sphi 0, %s97
    $region4: #{tpu_custom_call.1} parent=1 // loop_header_branch
      %18 = sbr.rel (%p16) target = $region8
    $region5: #{tpu_custom_call.1} parent=1 // loop_body
      %s20 = ssub.s32 %s15, 1
      %s21 = ssub.s32 %s15, 2
      %s22 = sadd.s32 %s15, 1
      %s23 = ssub.s32 %s15, %s22
      %p24 = scmp.eq.s32.totalorder %s23, 0
      %s26 = sadd.s32 %s25, 1
      %s27 = scalar_select %p24, %s25, %s26
      %p30 = pneg %p24
      %p31 = scmp.eq.s32.totalorder %s15, 1
      %p32 = por %p30, %p31
      %p33 = scmp.ne.s32.totalorder %s25, %s28
      %p34 = scmp.eq.s32.totalorder %s15, 0
      %p35 = por %p33, %p34
      %p36 = scmp.ne.s32.totalorder %s25, %s28
      %p37 = scmp.eq.s32.totalorder %s20, 1
      %p38 = por %p36, %p37
      %p39 = scmp.ne.s32.totalorder %s28, %s29
      %p40 = scmp.eq.s32.totalorder %s20, 0
      %p41 = por %p39, %p40
      %p42 = scmp.ne.s32.totalorder %s28, %s29
      %p43 = scmp.eq.s32.totalorder %s21, 1
      %p44 = por %p42, %p43
      %p46 = scmp.ne.s32.totalorder %s29, %s45
      %p47 = scmp.eq.s32.totalorder %s21, 0
      %p48 = por %p46, %p47
      %s50 = sadd.s32 %s49, 1
      %p53 = scmp.eq.s32.totalorder %s15, 1
      %p54 = scmp.ne.s32.totalorder %s49, %s51
      %p55 = scmp.eq.s32.totalorder %s15, 0
      %p56 = por %p54, %p55
      %p57 = scmp.ne.s32.totalorder %s49, %s51
      %p58 = scmp.eq.s32.totalorder %s20, 1
      %p59 = por %p57, %p58
      %p60 = scmp.ne.s32.totalorder %s51, %s52
      %p61 = scmp.eq.s32.totalorder %s20, 0
      %p62 = por %p60, %p61
      %p63 = scmp.ne.s32.totalorder %s51, %s52
      %p64 = scmp.eq.s32.totalorder %s21, 1
      %p65 = por %p63, %p64
      %p67 = scmp.ne.s32.totalorder %s52, %s66
      %p68 = scmp.eq.s32.totalorder %s21, 0
      %p69 = por %p67, %p68
      %s71 = sadd.s32 %s70, 1
      %p74 = scmp.eq.s32.totalorder %s15, 1
      %p75 = scmp.ne.s32.totalorder %s70, %s72
      %p76 = scmp.eq.s32.totalorder %s15, 0
      %p77 = por %p75, %p76
      %p78 = scmp.ne.s32.totalorder %s70, %s72
      %p79 = scmp.eq.s32.totalorder %s20, 1
      %p80 = por %p78, %p79
      %p81 = scmp.ne.s32.totalorder %s72, %s73
      %p82 = scmp.eq.s32.totalorder %s20, 0
      %p83 = por %p81, %p82
      %p84 = scmp.ne.s32.totalorder %s72, %s73
      %p85 = scmp.eq.s32.totalorder %s21, 1
      %p86 = por %p84, %p85
      %p88 = scmp.ne.s32.totalorder %s73, %s87
      %p89 = scmp.eq.s32.totalorder %s21, 0
      %p90 = por %p88, %p89
      %s91 = ssub.s32 %s15, %s22
      %p92 = scmp.eq.s32.totalorder %s91, 0
      %s94 = sadd.s32 %s93, 1
      %s95 = scalar_select %p92, %s93, %s94
      %p98 = pneg %p92
      %p99 = scmp.eq.s32.totalorder %s15, 1
      %p100 = por %p98, %p99
      %p101 = scmp.ne.s32.totalorder %s93, %s96
      %p102 = scmp.eq.s32.totalorder %s15, 0
      %p103 = por %p101, %p102
      %p104 = scmp.ne.s32.totalorder %s93, %s96
      %p105 = scmp.eq.s32.totalorder %s20, 1
      %p106 = por %p104, %p105
      %p107 = scmp.ne.s32.totalorder %s96, %s97
      %p108 = scmp.eq.s32.totalorder %s20, 0
      %p109 = por %p107, %p108
      %p110 = scmp.ne.s32.totalorder %s96, %s97
      %p111 = scmp.eq.s32.totalorder %s21, 1
      %p112 = por %p110, %p111
      %p114 = scmp.ne.s32.totalorder %s97, %s113
      %p115 = scmp.eq.s32.totalorder %s21, 0
      %p116 = por %p114, %p115
      %p117 = scmp.le.s32.totalorder 1, %s15
      %p118 = scmp.lt.s32.totalorder %s15, 3
      %p119 = pnand %p117, %p118
      %p120 = pneg %p119
      // Predicated region
      $region9: #{tpu_custom_call.1} parent=5 // pred_check
        _
      $region10: #{tpu_custom_call.1} parent=5 // pred_check_branch
        %122 = sbr.rel (%p119) target = $region12
      $region11: #{tpu_custom_call.1} parent=5 // pred_region
        %s123 = ssub.s32 %s15, 1
        // Predicated region
        $region13: #{tpu_custom_call.1} parent=11 // pred_check
          %p124 = pneg %p62
        $region14: #{tpu_custom_call.1} parent=11 // pred_check_branch
          %126 = sbr.rel (%p124) target = $region16
        $region15: #{tpu_custom_call.1} parent=11 // pred_region
          _
        $region16: #{tpu_custom_call.1} parent=11 // pred_fallthru
          _
        // Predicated region
        $region17: #{tpu_custom_call.1} parent=11 // pred_check
          %p127 = pneg %p83
        $region18: #{tpu_custom_call.1} parent=11 // pred_check_branch
          %129 = sbr.rel (%p127) target = $region20
        $region19: #{tpu_custom_call.1} parent=11 // pred_region
          _
        $region20: #{tpu_custom_call.1} parent=11 // pred_fallthru
          _
      $region12: #{tpu_custom_call.1} parent=5 // pred_fallthru
        _
      %p130 = scmp.lt.s32.totalorder %s15, 2
      // Predicated region
      $region21: #{tpu_custom_call.1} parent=5 // pred_check
        %p131 = pneg %p130
      $region22: #{tpu_custom_call.1} parent=5 // pred_check_branch
        %133 = sbr.rel (%p131) target = $region24
      $region23: #{tpu_custom_call.1} parent=5 // pred_region
        // Predicated region
        $region25: #{tpu_custom_call.1} parent=23 // pred_check
          %p134 = pneg %p35
        $region26: #{tpu_custom_call.1} parent=23 // pred_check_branch
          %136 = sbr.rel (%p134) target = $region28
        $region27: #{tpu_custom_call.1} parent=23 // pred_region
          %s137 = sand.u32 %s25, 1
          %s138 = scalar_lea.sflag [#allocation3], %s137
          %s139 = sand.u32 %s25, 1
          %s140 = smul.addr %s139, 48
          %s141 = scalar_lea.vmem [#allocation2], %s140
          %s143 = ssub.s32 768, 768
          %144 = vsyncadd %s138, %s143
          %s145 = smul.addr %s15, 6
          %s146 = smul.addr %s145, 128
          %s147 = scalar_lea.hbm %s0, %s146
          %s148 = sshll.u32 %s141, 4
          %s149 = int_to_ptr.vmem [resolvable:$true] %s148
          %154 = dma.hbm_to_vmem [thread:$0]  %s147, 768, %s149, %s138, 256, 256, 16
        $region28: #{tpu_custom_call.1} parent=23 // pred_fallthru
          _
      $region24: #{tpu_custom_call.1} parent=5 // pred_fallthru
        _
      %p155 = scmp.le.s32.totalorder 1, %s15
      %p156 = scmp.lt.s32.totalorder %s15, 3
      %p157 = pnand %p155, %p156
      %p158 = pneg %p157
      // Predicated region
      $region29: #{tpu_custom_call.1} parent=5 // pred_check
        _
      $region30: #{tpu_custom_call.1} parent=5 // pred_check_branch
        %160 = sbr.rel (%p157) target = $region32
      $region31: #{tpu_custom_call.1} parent=5 // pred_region
        %s161 = ssub.s32 %s15, 1
        %s162 = sand.u32 %s28, 1
        %s163 = scalar_lea.sflag [#allocation3], %s162
        %s164 = sand.u32 %s28, 1
        %s165 = smul.addr %s164, 48
        %s166 = scalar_lea.vmem [#allocation2], %s165
        // Predicated region
        $region33: #{tpu_custom_call.1} parent=31 // pred_check
          %p167 = pneg %p41
        $region34: #{tpu_custom_call.1} parent=31 // pred_check_branch
          %169 = sbr.rel (%p167) target = $region36
        $region35: #{tpu_custom_call.1} parent=31 // pred_region
          %170 = dma.done %s163, 768
        $region36: #{tpu_custom_call.1} parent=31 // pred_fallthru
          _
        %s171 = sand.u32 %s28, 1
        %s172 = scalar_lea.sflag [#allocation3], %s171
        %s173 = sand.u32 %s28, 1
        %s174 = smul.addr %s173, 48
        %s175 = scalar_lea.vmem [#allocation2], %s174
        %p176 = pneg %p41
        %p177 = pneg %p38
        %p178 = pneg %p62
        %p179 = pneg %p59
        %p180 = pneg %p83
        %p181 = pneg %p80
        %p182 = pneg %p109
        %p183 = pneg %p106
        %s184 = sand.u32 %s96, 1
        %s185 = scalar_lea.sflag [#allocation4], %s184
        %s186 = sand.u32 %s96, 1
        %s187 = smul.addr %s186, 48
        %s188 = scalar_lea.vmem [#allocation5], %s187
        %v189 = vld [vmem:[%s1] sm:$0xf]
        %v190 = vld [vmem:[%s166] sm:$0x3]
        %v191 = vld [vmem:[%s166 + $0x8] sm:$0x3]
        %v192 = vld [vmem:[%s166] sm:$0xc]
        %v193 = vld [vmem:[%s166 + $0x8] sm:$0xc]
        %v194 = vld [vmem:[%s166] sm:$0xf0]
        %v195 = vld [vmem:[%s166 + $0x8] sm:$0xf0]
        %v196 = vxor.u32 %v190, 2147483648
        %v197 = vxor.u32 %v191, 2147483648
        %v198 = vmul.f32 %v196, 1.442695
        %v199 = vpow.pop %v198
        %v200 = vmul.f32 %v197, 1.442695
        %v201 = vpow.pop %v200
        %v202 = vadd.f32 %v199, 1.0
        %v203 = vadd.f32 %v201, 1.0
        %v204 = vrcp.pop %v202
        %v205 = vmul.f32 1.0, %v204
        %v206 = vrcp.pop %v203
        %v207 = vmul.f32 1.0, %v206
        %v208 = vmul.f32 %v205, 4.0
        %v209 = vmul.f32 %v207, 4.0
        %v212 = vunpack.c.l.s4 1983009808
        %v213 = vunpack.c.0.s8 %v212
        %v214 = vlaneseq
        %v215 = vshrl.u32 %v214, 7
        %v216 = vsub.s32 %v213, %v215
        %v217 = vrot.slane %v189, %v216
        %v218 = vcombine.high %v217, %v217
        %v221 = vadd.f32 %v208, %v217
        %v222 = vadd.f32 %v209, %v218
        %v223 = vmul.f32 %v192, 1.442695
        %v224 = vpow.pop %v223
        %v225 = vmul.f32 %v193, 1.442695
        %v226 = vpow.pop %v225
        %v227 = vld [vmem:[%s2] sm:$0x3]
        %229 = vset.pattern.permute.xlu0 0
        %230 = vperm.xlu0 %229, %v227
        %v231 = vpop.permute.xlu0 %230
        %v232 = vrot.slane %v231, 6
        %v234 = vmul.f32 %v224, %v232
        %v235 = vmul.f32 %v226, %v232
        %v236 = vxor.u32 %v194, 2147483648
        %v237 = vxor.u32 %v195, 2147483648
        %v238 = vmul.f32 %v236, 1.442695
        %v239 = vpow.pop %v238
        %v240 = vmul.f32 %v237, 1.442695
        %v241 = vpow.pop %v240
        %v242 = vadd.f32 %v239, 1.0
        %v243 = vadd.f32 %v241, 1.0
        %v244 = vrcp.pop %v242
        %v245 = vmul.f32 1.0, %v244
        %v246 = vrcp.pop %v243
        %v247 = vmul.f32 1.0, %v246
        %248 = vst [vmem:[%s188] sm:$0x3] %v221
        %249 = vst [vmem:[%s188 + $0x8] sm:$0x3] %v222
        %250 = vst [vmem:[%s188] sm:$0xc] %v234
        %251 = vst [vmem:[%s188 + $0x8] sm:$0xc] %v235
        %252 = vst [vmem:[%s188] sm:$0xf0] %v245
        %253 = vst [vmem:[%s188 + $0x8] sm:$0xf0] %v247
        %v254 = vld [vmem:[%s166 + $0x10] sm:$0x3]
        %v255 = vld [vmem:[%s166 + $0x18] sm:$0x3]
        %v256 = vld [vmem:[%s166 + $0x10] sm:$0xc]
        %v257 = vld [vmem:[%s166 + $0x18] sm:$0xc]
        %v258 = vld [vmem:[%s166 + $0x10] sm:$0xf0]
        %v259 = vld [vmem:[%s166 + $0x18] sm:$0xf0]
        %v260 = vxor.u32 %v254, 2147483648
        %v261 = vxor.u32 %v255, 2147483648
        %v262 = vmul.f32 %v260, 1.442695
        %v263 = vpow.pop %v262
        %v264 = vmul.f32 %v261, 1.442695
        %v265 = vpow.pop %v264
        %v266 = vadd.f32 %v263, 1.0
        %v267 = vadd.f32 %v265, 1.0
        %v268 = vrcp.pop %v266
        %v269 = vmul.f32 1.0, %v268
        %v270 = vrcp.pop %v267
        %v271 = vmul.f32 1.0, %v270
        %v272 = vmul.f32 %v269, 4.0
        %v273 = vmul.f32 %v271, 4.0
        %v274 = vadd.f32 %v272, %v217
        %v275 = vadd.f32 %v273, %v218
        %v276 = vmul.f32 %v256, 1.442695
        %v277 = vpow.pop %v276
        %v278 = vmul.f32 %v257, 1.442695
        %v279 = vpow.pop %v278
        %v280 = vld [vmem:[%s2 + $0x2] sm:$0x3]
        %282 = vset.pattern.permute.xlu0 0
        %283 = vperm.xlu0 %282, %v280
        %v284 = vpop.permute.xlu0 %283
        %v285 = vrot.slane %v284, 6
        %v287 = vmul.f32 %v277, %v285
        %v288 = vmul.f32 %v279, %v285
        %v289 = vxor.u32 %v258, 2147483648
        %v290 = vxor.u32 %v259, 2147483648
        %v291 = vmul.f32 %v289, 1.442695
        %v292 = vpow.pop %v291
        %v293 = vmul.f32 %v290, 1.442695
        %v294 = vpow.pop %v293
        %v295 = vadd.f32 %v292, 1.0
        %v296 = vadd.f32 %v294, 1.0
        %v297 = vrcp.pop %v295
        %v298 = vmul.f32 1.0, %v297
        %v299 = vrcp.pop %v296
        %v300 = vmul.f32 1.0, %v299
        %301 = vst [vmem:[%s188 + $0x10] sm:$0x3] %v274
        %302 = vst [vmem:[%s188 + $0x18] sm:$0x3] %v275
        %303 = vst [vmem:[%s188 + $0x10] sm:$0xc] %v287
        %304 = vst [vmem:[%s188 + $0x18] sm:$0xc] %v288
        %305 = vst [vmem:[%s188 + $0x10] sm:$0xf0] %v298
        %306 = vst [vmem:[%s188 + $0x18] sm:$0xf0] %v300
        %v307 = vld [vmem:[%s166 + $0x20] sm:$0x3]
        %v308 = vld [vmem:[%s166 + $0x28] sm:$0x3]
        %v309 = vld [vmem:[%s166 + $0x20] sm:$0xc]
        %v310 = vld [vmem:[%s166 + $0x28] sm:$0xc]
        %v311 = vld [vmem:[%s166 + $0x20] sm:$0xf0]
        %v312 = vld [vmem:[%s166 + $0x28] sm:$0xf0]
        %v313 = vxor.u32 %v307, 2147483648
        %v314 = vxor.u32 %v308, 2147483648
        %v315 = vmul.f32 %v313, 1.442695
        %v316 = vpow.pop %v315
        %v317 = vmul.f32 %v314, 1.442695
        %v318 = vpow.pop %v317
        %v319 = vadd.f32 %v316, 1.0
        %v320 = vadd.f32 %v318, 1.0
        %v321 = vrcp.pop %v319
        %v322 = vmul.f32 1.0, %v321
        %v323 = vrcp.pop %v320
        %v324 = vmul.f32 1.0, %v323
        %v325 = vmul.f32 %v322, 4.0
        %v326 = vmul.f32 %v324, 4.0
        %v327 = vadd.f32 %v325, %v217
        %v328 = vadd.f32 %v326, %v218
        %v329 = vmul.f32 %v309, 1.442695
        %v330 = vpow.pop %v329
        %v331 = vmul.f32 %v310, 1.442695
        %v332 = vpow.pop %v331
        %v333 = vld [vmem:[%s2 + $0x4] sm:$0x3]
        %335 = vset.pattern.permute.xlu0 0
        %336 = vperm.xlu0 %335, %v333
        %v337 = vpop.permute.xlu0 %336
        %v338 = vrot.slane %v337, 6
        %v340 = vmul.f32 %v330, %v338
        %v341 = vmul.f32 %v332, %v338
        %v342 = vxor.u32 %v311, 2147483648
        %v343 = vxor.u32 %v312, 2147483648
        %v344 = vmul.f32 %v342, 1.442695
        %v345 = vpow.pop %v344
        %v346 = vmul.f32 %v343, 1.442695
        %v347 = vpow.pop %v346
        %v348 = vadd.f32 %v345, 1.0
        %v349 = vadd.f32 %v347, 1.0
        %v350 = vrcp.pop %v348
        %v351 = vmul.f32 1.0, %v350
        %v352 = vrcp.pop %v349
        %v353 = vmul.f32 1.0, %v352
        %354 = vst [vmem:[%s188 + $0x20] sm:$0x3] %v327
        %355 = vst [vmem:[%s188 + $0x28] sm:$0x3] %v328
        %356 = vst [vmem:[%s188 + $0x20] sm:$0xc] %v340
        %357 = vst [vmem:[%s188 + $0x28] sm:$0xc] %v341
        %358 = vst [vmem:[%s188 + $0x20] sm:$0xf0] %v351
        %359 = vst [vmem:[%s188 + $0x28] sm:$0xf0] %v353
        %s360 = sand.u32 %s96, 1
        %s361 = scalar_lea.sflag [#allocation4], %s360
        %s362 = sand.u32 %s96, 1
        %s363 = smul.addr %s362, 48
        %s364 = scalar_lea.vmem [#allocation5], %s363
        // Predicated region
        $region37: #{tpu_custom_call.1} parent=31 // pred_check
          %p365 = pneg %p106
        $region38: #{tpu_custom_call.1} parent=31 // pred_check_branch
          %367 = sbr.rel (%p365) target = $region40
        $region39: #{tpu_custom_call.1} parent=31 // pred_region
          %s369 = ssub.s32 768, 768
          %370 = vsyncadd %s361, %s369
          %s371 = smul.addr %s20, 6
          %s372 = smul.addr %s371, 128
          %s373 = scalar_lea.hbm %s3, %s372
          %s374 = sshll.u32 %s364, 4
          %s375 = int_to_ptr.vmem [resolvable:$true] %s374
          %380 = dma.vmem_to_hbm [thread:$0]  %s375, 768, %s373, %s361, 256, 256, 16
        $region40: #{tpu_custom_call.1} parent=31 // pred_fallthru
          _
      $region32: #{tpu_custom_call.1} parent=5 // pred_fallthru
        _
      %p381 = scmp.le.s32.totalorder 2, %s15
      // Predicated region
      $region41: #{tpu_custom_call.1} parent=5 // pred_check
        %p382 = pneg %p381
      $region42: #{tpu_custom_call.1} parent=5 // pred_check_branch
        %384 = sbr.rel (%p382) target = $region44
      $region43: #{tpu_custom_call.1} parent=5 // pred_region
        %s385 = ssub.s32 %s15, 2
        // Predicated region
        $region45: #{tpu_custom_call.1} parent=43 // pred_check
          %p386 = pneg %p112
        $region46: #{tpu_custom_call.1} parent=43 // pred_check_branch
          %388 = sbr.rel (%p386) target = $region48
        $region47: #{tpu_custom_call.1} parent=43 // pred_region
          %s389 = sand.u32 %s97, 1
          %s390 = scalar_lea.sflag [#allocation4], %s389
          %s391 = sand.u32 %s97, 1
          %s392 = smul.addr %s391, 48
          %s393 = scalar_lea.vmem [#allocation5], %s392
          %394 = dma.done %s390, 768
        $region48: #{tpu_custom_call.1} parent=43 // pred_fallthru
          _
      $region44: #{tpu_custom_call.1} parent=5 // pred_fallthru
        _
    $region6: #{tpu_custom_call.1} parent=1 // loop_footer
      %s19 = sadd.s32 1, %s15
    $region7: #{tpu_custom_call.1} parent=1 // loop_footer_branch
      %14 = sbr.rel target = $region3
    $region8: #{tpu_custom_call.1} parent=1 // loop_exit
      _
    %395 = vsyncpa [#allocation3], 1
    %s396 = scalar_lea.sflag [#allocation3], 1
    %397 = vsyncpa %s396, 1
    %398 = vsyncpa [#allocation4], 1
    %s399 = scalar_lea.sflag [#allocation4], 1
    %400 = vsyncpa %s399, 1

</llo_original>
